<compile_context>
chip_gen: v7x
topology: tpu7x:2x2x1
jax: 0.10.0
libtpu: 0.0.40
codegen_flags: <defaults>
</compile_context>

<pallas_src>
import functools
import math

import jax
import jax.numpy as jnp
from jax.experimental import pallas as pl
from jax.experimental.pallas import tpu as pltpu

IN_FEATURES = 28 * 28   # 784
HIDDEN = 64
NUM_CLASSES = 10
OUT_PAD = 128           # lane-dense output slab width (>= NUM_CLASSES)
NEG_BIG = -1e30         # padded logit lanes -> exp() underflows to 0


def _round_up(n, m):
    return ((n + m - 1) // m) * m


def mlp_kernel(x_ref,
               w1_ref, b1_ref,
               w2_ref, b2_ref,
               w3_ref, b3_ref,
               w4_ref, b4_ref,
               o_ref):
    x = x_ref[...]                                                   # (TB, 784) bf16

    # fc1 + ReLU
    h = jnp.dot(x, w1_ref[...], preferred_element_type=jnp.float32) + b1_ref[...]
    h = jnp.maximum(h, 0.0).astype(jnp.bfloat16)

    # fc2 + ReLU
    h = jnp.dot(h, w2_ref[...], preferred_element_type=jnp.float32) + b2_ref[...]
    h = jnp.maximum(h, 0.0).astype(jnp.bfloat16)

    # fc3 + ReLU
    h = jnp.dot(h, w3_ref[...], preferred_element_type=jnp.float32) + b3_ref[...]
    h = jnp.maximum(h, 0.0).astype(jnp.bfloat16)

    # fc4 -> lane-padded logits (TB, 128); lanes >= NUM_CLASSES carry NEG_BIG
    logits = jnp.dot(h, w4_ref[...], preferred_element_type=jnp.float32) + b4_ref[...]

    # log_softmax over the class axis (padded lanes contribute exp(.) == 0)
    m = jnp.max(logits, axis=1, keepdims=True)
    shifted = logits - m
    lse = jnp.log(jnp.sum(jnp.exp(shifted), axis=1, keepdims=True))
    o_ref[...] = shifted - lse


def prepare_kernel_params(params):
    """f32 (in,out)/(1,out) params -> bf16 weights + f32 biases, fc4 lane-padded."""
    w1, b1, w2, b2, w3, b3, w4, b4 = params
    w4p = jnp.zeros((HIDDEN, OUT_PAD), jnp.float32).at[:, :NUM_CLASSES].set(w4)
    b4p = jnp.full((1, OUT_PAD), NEG_BIG, jnp.float32).at[:, :NUM_CLASSES].set(b4)
    return (w1.astype(jnp.bfloat16), b1,
            w2.astype(jnp.bfloat16), b2,
            w3.astype(jnp.bfloat16), b3,
            w4p.astype(jnp.bfloat16), b4p)


@functools.partial(jax.jit, static_argnames=("tb",))
def net_forward(x, kparams, *, tb=512):
    """x: (B, 784) float; kparams: output of prepare_kernel_params. Returns (B, 10) f32."""
    B = x.shape[0]
    tb = min(tb, _round_up(B, 16))          # at least 16 rows (bf16 sublane pack)
    Bp = _round_up(B, tb)                   # pad batch to a tile multiple
    grid = (Bp // tb,)

    x_bf16 = x.astype(jnp.bfloat16)
    if Bp != B:
        x_bf16 = jnp.pad(x_bf16, ((0, Bp - B), (0, 0)))

    w1, b1, w2, b2, w3, b3, w4, b4 = kparams

    def resident(shape):
        # Full-array block whose index never changes -> stays VMEM-resident.
        return pl.BlockSpec(shape, lambda i: (0, 0))

    out = pl.pallas_call(
        mlp_kernel,
        out_shape=jax.ShapeDtypeStruct((Bp, OUT_PAD), jnp.float32),
        grid=grid,
        in_specs=[
            pl.BlockSpec((tb, IN_FEATURES), lambda i: (i, 0)),   # x: batch-tiled
            resident(w1.shape), resident(b1.shape),
            resident(w2.shape), resident(b2.shape),
            resident(w3.shape), resident(b3.shape),
            resident(w4.shape), resident(b4.shape),
        ],
        out_specs=pl.BlockSpec((tb, OUT_PAD), lambda i: (i, 0)),
        compiler_params=pltpu.CompilerParams(
            dimension_semantics=("parallel",)),
    )(x_bf16, w1, b1, w2, b2, w3, b3, w4, b4)

    return out[:B, :NUM_CLASSES]


def init_params(key):
    """Mirror nn.Linear init: U(-1/sqrt(fan_in), 1/sqrt(fan_in)).

    Weights stored as (in_features, out_features); biases as (1, out_features).
    """
    dims = [(IN_FEATURES, HIDDEN), (HIDDEN, HIDDEN), (HIDDEN, HIDDEN), (HIDDEN, NUM_CLASSES)]
    params = []
    keys = jax.random.split(key, 2 * len(dims))
    for i, (fan_in, fan_out) in enumerate(dims):
        bound = 1.0 / math.sqrt(fan_in)
        w = jax.random.uniform(keys[2 * i], (fan_in, fan_out),
                               minval=-bound, maxval=bound, dtype=jnp.float32)
        b = jax.random.uniform(keys[2 * i + 1], (1, fan_out),
                               minval=-bound, maxval=bound, dtype=jnp.float32)
        params += [w, b]
    return tuple(params)


def reference_forward(x, params):
    """Pure-JAX f32 reference (true PyTorch semantics)."""
    w1, b1, w2, b2, w3, b3, w4, b4 = params
    h = jnp.maximum(x @ w1 + b1, 0.0)
    h = jnp.maximum(h @ w2 + b2, 0.0)
    h = jnp.maximum(h @ w3 + b3, 0.0)
    logits = h @ w4 + b4
    return jax.nn.log_softmax(logits, axis=1)


if __name__ == "__main__":
    key = jax.random.PRNGKey(0)
    pkey, xkey = jax.random.split(key)

    params = init_params(pkey)
    kparams = prepare_kernel_params(params)

    # Deliberately not a multiple of the tile to exercise batch padding + a >1 grid.
    B = 300
    x = jax.random.normal(xkey, (B, IN_FEATURES), dtype=jnp.float32)

    out = net_forward(x, kparams, tb=128)   # grid = (3,), last tile row-padded
    out = jax.block_until_ready(out)

    ref = reference_forward(x, params)
    assert out.shape == (B, NUM_CLASSES)
    assert bool(jnp.all(jnp.isfinite(out)))
    # bf16 matmul operands (f32 accumulation) vs the full-f32 reference.
    assert jnp.allclose(out, ref, atol=5e-2, rtol=5e-2), \
        f"max abs diff {float(jnp.max(jnp.abs(out - ref)))}"

    print("KERNEL_OK")
</pallas_src>

<mosaic_0001>
module attributes {stable_mosaic.version = 11 : i64} {
  func.func @mlp_kernel(%arg0: i32, %arg1: memref<128x784xbf16, #tpu.memory_space<vmem>>, %arg2: memref<784x64xbf16, #tpu.memory_space<vmem>>, %arg3: memref<1x64xf32, #tpu.memory_space<vmem>>, %arg4: memref<64x64xbf16, #tpu.memory_space<vmem>>, %arg5: memref<1x64xf32, #tpu.memory_space<vmem>>, %arg6: memref<64x64xbf16, #tpu.memory_space<vmem>>, %arg7: memref<1x64xf32, #tpu.memory_space<vmem>>, %arg8: memref<64x128xbf16, #tpu.memory_space<vmem>>, %arg9: memref<1x128xf32, #tpu.memory_space<vmem>>, %arg10: memref<128x128xf32, #tpu.memory_space<vmem>>) attributes {dimension_semantics = [#tpu.dimension_semantics<parallel>], iteration_bounds = array<i64: 3>, scalar_prefetch = 0 : i64, scratch_operands = 0 : i64, tpu.core_type = #tpu.core_type<tc>, window_params = [{transform_indices = @transform_0, window_bounds = array<i64: 128, 784>}, {pipeline_mode = #tpu.pipeline_mode<synchronous>, transform_indices = @transform_1, window_bounds = array<i64: 784, 64>}, {pipeline_mode = #tpu.pipeline_mode<synchronous>, transform_indices = @transform_2, window_bounds = array<i64: 1, 64>}, {pipeline_mode = #tpu.pipeline_mode<synchronous>, transform_indices = @transform_3, window_bounds = array<i64: 64, 64>}, {pipeline_mode = #tpu.pipeline_mode<synchronous>, transform_indices = @transform_4, window_bounds = array<i64: 1, 64>}, {pipeline_mode = #tpu.pipeline_mode<synchronous>, transform_indices = @transform_5, window_bounds = array<i64: 64, 64>}, {pipeline_mode = #tpu.pipeline_mode<synchronous>, transform_indices = @transform_6, window_bounds = array<i64: 1, 64>}, {pipeline_mode = #tpu.pipeline_mode<synchronous>, transform_indices = @transform_7, window_bounds = array<i64: 64, 128>}, {pipeline_mode = #tpu.pipeline_mode<synchronous>, transform_indices = @transform_8, window_bounds = array<i64: 1, 128>}, {transform_indices = @transform_9, window_bounds = array<i64: 128, 128>}]} {
    %c0 = arith.constant 0 : index
    %c0_0 = arith.constant 0 : index
    %0 = vector.load %arg1[%c0, %c0_0] : memref<128x784xbf16, #tpu.memory_space<vmem>>, vector<128x784xbf16>
    %c0_1 = arith.constant 0 : index
    %c0_2 = arith.constant 0 : index
    %1 = vector.load %arg2[%c0_1, %c0_2] : memref<784x64xbf16, #tpu.memory_space<vmem>>, vector<784x64xbf16>
    %cst = arith.constant dense<0.000000e+00> : vector<128x64xf32>
    %2 = tpu.matmul %0, %1, %cst {dimension_numbers = #tpu.dot_dimension_numbers<[1], [0], [0], [1], [0, 0, 1, 1], [], []>} : vector<128x784xbf16>, vector<784x64xbf16>, vector<128x64xf32> -> vector<128x64xf32>
    %c0_3 = arith.constant 0 : index
    %c0_4 = arith.constant 0 : index
    %3 = vector.load %arg3[%c0_3, %c0_4] : memref<1x64xf32, #tpu.memory_space<vmem>>, vector<1x64xf32>
    %4 = vector.broadcast %3 : vector<1x64xf32> to vector<128x64xf32>
    %5 = arith.addf %2, %4 : vector<128x64xf32>
    %cst_5 = arith.constant 0.000000e+00 : f32
    %6 = vector.broadcast %cst_5 : f32 to vector<128x64xf32>
    %7 = arith.maximumf %5, %6 : vector<128x64xf32>
    %8 = arith.truncf %7 : vector<128x64xf32> to vector<128x64xbf16>
    %c0_6 = arith.constant 0 : index
    %c0_7 = arith.constant 0 : index
    %9 = vector.load %arg4[%c0_6, %c0_7] : memref<64x64xbf16, #tpu.memory_space<vmem>>, vector<64x64xbf16>
    %cst_8 = arith.constant dense<0.000000e+00> : vector<128x64xf32>
    %10 = tpu.matmul %8, %9, %cst_8 {dimension_numbers = #tpu.dot_dimension_numbers<[1], [0], [0], [1], [0, 0, 1, 1], [], []>} : vector<128x64xbf16>, vector<64x64xbf16>, vector<128x64xf32> -> vector<128x64xf32>
    %c0_9 = arith.constant 0 : index
    %c0_10 = arith.constant 0 : index
    %11 = vector.load %arg5[%c0_9, %c0_10] : memref<1x64xf32, #tpu.memory_space<vmem>>, vector<1x64xf32>
    %12 = vector.broadcast %11 : vector<1x64xf32> to vector<128x64xf32>
    %13 = arith.addf %10, %12 : vector<128x64xf32>
    %cst_11 = arith.constant 0.000000e+00 : f32
    %14 = vector.broadcast %cst_11 : f32 to vector<128x64xf32>
    %15 = arith.maximumf %13, %14 : vector<128x64xf32>
    %16 = arith.truncf %15 : vector<128x64xf32> to vector<128x64xbf16>
    %c0_12 = arith.constant 0 : index
    %c0_13 = arith.constant 0 : index
    %17 = vector.load %arg6[%c0_12, %c0_13] : memref<64x64xbf16, #tpu.memory_space<vmem>>, vector<64x64xbf16>
    %cst_14 = arith.constant dense<0.000000e+00> : vector<128x64xf32>
    %18 = tpu.matmul %16, %17, %cst_14 {dimension_numbers = #tpu.dot_dimension_numbers<[1], [0], [0], [1], [0, 0, 1, 1], [], []>} : vector<128x64xbf16>, vector<64x64xbf16>, vector<128x64xf32> -> vector<128x64xf32>
    %c0_15 = arith.constant 0 : index
    %c0_16 = arith.constant 0 : index
    %19 = vector.load %arg7[%c0_15, %c0_16] : memref<1x64xf32, #tpu.memory_space<vmem>>, vector<1x64xf32>
    %20 = vector.broadcast %19 : vector<1x64xf32> to vector<128x64xf32>
    %21 = arith.addf %18, %20 : vector<128x64xf32>
    %cst_17 = arith.constant 0.000000e+00 : f32
    %22 = vector.broadcast %cst_17 : f32 to vector<128x64xf32>
    %23 = arith.maximumf %21, %22 : vector<128x64xf32>
    %24 = arith.truncf %23 : vector<128x64xf32> to vector<128x64xbf16>
    %c0_18 = arith.constant 0 : index
    %c0_19 = arith.constant 0 : index
    %25 = vector.load %arg8[%c0_18, %c0_19] : memref<64x128xbf16, #tpu.memory_space<vmem>>, vector<64x128xbf16>
    %cst_20 = arith.constant dense<0.000000e+00> : vector<128x128xf32>
    %26 = tpu.matmul %24, %25, %cst_20 {dimension_numbers = #tpu.dot_dimension_numbers<[1], [0], [0], [1], [0, 0, 1, 1], [], []>} : vector<128x64xbf16>, vector<64x128xbf16>, vector<128x128xf32> -> vector<128x128xf32>
    %c0_21 = arith.constant 0 : index
    %c0_22 = arith.constant 0 : index
    %27 = vector.load %arg9[%c0_21, %c0_22] : memref<1x128xf32, #tpu.memory_space<vmem>>, vector<1x128xf32>
    %28 = vector.broadcast %27 : vector<1x128xf32> to vector<128x128xf32>
    %29 = arith.addf %26, %28 : vector<128x128xf32>
    %cst_23 = arith.constant dense<0xFF800000> : vector<128xf32>
    %30 = vector.multi_reduction <maximumf>, %29, %cst_23 [1] : vector<128x128xf32> to vector<128xf32>
    %31 = vector.shape_cast %30 : vector<128xf32> to vector<128x1xf32>
    %32 = vector.broadcast %31 : vector<128x1xf32> to vector<128x128xf32>
    %33 = arith.subf %29, %32 : vector<128x128xf32>
    %34 = math.exp %33 : vector<128x128xf32>
    %cst_24 = arith.constant dense<0.000000e+00> : vector<128xf32>
    %35 = vector.multi_reduction <add>, %34, %cst_24 [1] : vector<128x128xf32> to vector<128xf32>
    %36 = vector.shape_cast %35 : vector<128xf32> to vector<128x1xf32>
    %37 = math.log %36 : vector<128x1xf32>
    %38 = vector.broadcast %37 : vector<128x1xf32> to vector<128x128xf32>
    %39 = arith.subf %33, %38 : vector<128x128xf32>
    %c0_25 = arith.constant 0 : index
    %c0_26 = arith.constant 0 : index
    %40 = vector.load %arg10[%c0_25, %c0_26] : memref<128x128xf32, #tpu.memory_space<vmem>>, vector<128x128xf32>
    tpu.vector_store %arg10[%c0_25, %c0_26], %39 {strides = array<i32>} : memref<128x128xf32, #tpu.memory_space<vmem>>, vector<128x128xf32>,
    return
  }
  func.func @transform_0(%arg0: i32) -> (i32, i32) {
    %c0_i32 = arith.constant 0 : i32
    %c0_i32_0 = arith.constant 0 : i32
    return %arg0, %c0_i32 : i32, i32
  }
  func.func @transform_1(%arg0: i32) -> (i32, i32) {
    %c0_i32 = arith.constant 0 : i32
    %c0_i32_0 = arith.constant 0 : i32
    %c0_i32_1 = arith.constant 0 : i32
    return %c0_i32, %c0_i32_0 : i32, i32
  }
  func.func @transform_2(%arg0: i32) -> (i32, i32) {
    %c0_i32 = arith.constant 0 : i32
    %c0_i32_0 = arith.constant 0 : i32
    %c0_i32_1 = arith.constant 0 : i32
    return %c0_i32, %c0_i32_0 : i32, i32
  }
  func.func @transform_3(%arg0: i32) -> (i32, i32) {
    %c0_i32 = arith.constant 0 : i32
    %c0_i32_0 = arith.constant 0 : i32
    %c0_i32_1 = arith.constant 0 : i32
    return %c0_i32, %c0_i32_0 : i32, i32
  }
  func.func @transform_4(%arg0: i32) -> (i32, i32) {
    %c0_i32 = arith.constant 0 : i32
    %c0_i32_0 = arith.constant 0 : i32
    %c0_i32_1 = arith.constant 0 : i32
    return %c0_i32, %c0_i32_0 : i32, i32
  }
  func.func @transform_5(%arg0: i32) -> (i32, i32) {
    %c0_i32 = arith.constant 0 : i32
    %c0_i32_0 = arith.constant 0 : i32
    %c0_i32_1 = arith.constant 0 : i32
    return %c0_i32, %c0_i32_0 : i32, i32
  }
  func.func @transform_6(%arg0: i32) -> (i32, i32) {
    %c0_i32 = arith.constant 0 : i32
    %c0_i32_0 = arith.constant 0 : i32
    %c0_i32_1 = arith.constant 0 : i32
    return %c0_i32, %c0_i32_0 : i32, i32
  }
  func.func @transform_7(%arg0: i32) -> (i32, i32) {
    %c0_i32 = arith.constant 0 : i32
    %c0_i32_0 = arith.constant 0 : i32
    %c0_i32_1 = arith.constant 0 : i32
    return %c0_i32, %c0_i32_0 : i32, i32
  }
  func.func @transform_8(%arg0: i32) -> (i32, i32) {
    %c0_i32 = arith.constant 0 : i32
    %c0_i32_0 = arith.constant 0 : i32
    %c0_i32_1 = arith.constant 0 : i32
    return %c0_i32, %c0_i32_0 : i32, i32
  }
  func.func @transform_9(%arg0: i32) -> (i32, i32) {
    %c0_i32 = arith.constant 0 : i32
    %c0_i32_0 = arith.constant 0 : i32
    return %arg0, %c0_i32 : i32, i32
  }
}

</mosaic_0001>

<llo_original>
// kernel: net_forward.1
$region0: #{net_forward.1}
  #allocation0 [shape = 'u32[]', space=smem, size = 0x4, offset = 0x4, fixed_abs, tag = 'smem constant byte address 0x4 - core index']
  #allocation1 [shape = 'u32[144,128]{1,0:T(1,128)}', space=vmem, size = 0x12000, scoped, tag = 'internal scratch']
  %s0 = inlined_call_operand.vmem [shape: bf16[384,784], index: 0, kind: input, shape index: {}]
  %s1 = inlined_call_operand.vmem [shape: bf16[784,64], index: 1, kind: input, shape index: {}]
  %s2 = inlined_call_operand.vmem [shape: f32[1,64], index: 2, kind: input, shape index: {}]
  %s3 = inlined_call_operand.vmem [shape: bf16[64,64], index: 3, kind: input, shape index: {}]
  %s4 = inlined_call_operand.vmem [shape: f32[1,64], index: 4, kind: input, shape index: {}]
  %s5 = inlined_call_operand.vmem [shape: bf16[64,64], index: 5, kind: input, shape index: {}]
  %s6 = inlined_call_operand.vmem [shape: f32[1,64], index: 6, kind: input, shape index: {}]
  %s7 = inlined_call_operand.vmem [shape: bf16[64,128], index: 7, kind: input, shape index: {}]
  %s8 = inlined_call_operand.vmem [shape: f32[1,128], index: 8, kind: input, shape index: {}]
  %s9 = inlined_call_operand.vmem [shape: f32[384,128], index: 9, kind: output, shape index: {}]
  %s10 = sld [smem:[#allocation0]]
  $region69: #{net_forward.1} parent=0
    _
  %s12 = ssub.s32 1, %s10
  %s13 = scalar_select 0, %s12, %s10
  loop: start=0, step=1, limit=5
  $region2: #{net_forward.1} parent=0 // loop_pre_header
    _
  $region3: #{net_forward.1} parent=0 // loop_header
    %s15 = sphi 0, %s19
    %p16 = scmp.ge.s32.totalorder %s15, 5
    %s25 = sphi 0, %s27
    %s28 = sphi 0, %s25
    %s29 = sphi 0, %s28
    %s45 = sphi 0, %s29
    %s49 = sphi 0, %s49
    %s51 = sphi 0, %s49
    %s52 = sphi 0, %s51
    %s66 = sphi 0, %s52
    %s70 = sphi 0, %s70
    %s72 = sphi 0, %s70
    %s73 = sphi 0, %s72
    %s87 = sphi 0, %s73
    %s91 = sphi 0, %s91
    %s93 = sphi 0, %s91
    %s94 = sphi 0, %s93
    %s108 = sphi 0, %s94
    %s112 = sphi 0, %s112
    %s114 = sphi 0, %s112
    %s115 = sphi 0, %s114
    %s129 = sphi 0, %s115
    %s133 = sphi 0, %s133
    %s135 = sphi 0, %s133
    %s136 = sphi 0, %s135
    %s150 = sphi 0, %s136
    %s154 = sphi 0, %s154
    %s156 = sphi 0, %s154
    %s157 = sphi 0, %s156
    %s171 = sphi 0, %s157
    %s175 = sphi 0, %s175
    %s177 = sphi 0, %s175
    %s178 = sphi 0, %s177
    %s192 = sphi 0, %s178
    %s196 = sphi 0, %s196
    %s198 = sphi 0, %s196
    %s199 = sphi 0, %s198
    %s213 = sphi 0, %s199
    %s219 = sphi 0, %s221
    %s222 = sphi 0, %s219
    %s223 = sphi 0, %s222
    %s239 = sphi 0, %s223
  $region4: #{net_forward.1} parent=0 // loop_header_branch
    %18 = sbr.rel (%p16) target = $region8
  $region5: #{net_forward.1} parent=0 // loop_body
    %s20 = ssub.s32 %s15, 1
    %s21 = ssub.s32 %s15, 2
    %s22 = sadd.s32 %s15, 1
    %s23 = ssub.s32 %s15, %s22
    %p24 = scmp.eq.s32.totalorder %s23, 0
    %s26 = sadd.s32 %s25, 1
    %s27 = scalar_select %p24, %s25, %s26
    %p30 = pneg %p24
    %p31 = scmp.eq.s32.totalorder %s15, 2
    %p32 = por %p30, %p31
    %p33 = scmp.ne.s32.totalorder %s25, %s28
    %p34 = scmp.eq.s32.totalorder %s15, 0
    %p35 = por %p33, %p34
    %p36 = scmp.ne.s32.totalorder %s25, %s28
    %p37 = scmp.eq.s32.totalorder %s20, 2
    %p38 = por %p36, %p37
    %p39 = scmp.ne.s32.totalorder %s28, %s29
    %p40 = scmp.eq.s32.totalorder %s20, 0
    %p41 = por %p39, %p40
    %p42 = scmp.ne.s32.totalorder %s28, %s29
    %p43 = scmp.eq.s32.totalorder %s21, 2
    %p44 = por %p42, %p43
    %p46 = scmp.ne.s32.totalorder %s29, %s45
    %p47 = scmp.eq.s32.totalorder %s21, 0
    %p48 = por %p46, %p47
    %s50 = sadd.s32 %s49, 1
    %p53 = scmp.eq.s32.totalorder %s15, 2
    %p54 = scmp.ne.s32.totalorder %s49, %s51
    %p55 = scmp.eq.s32.totalorder %s15, 0
    %p56 = por %p54, %p55
    %p57 = scmp.ne.s32.totalorder %s49, %s51
    %p58 = scmp.eq.s32.totalorder %s20, 2
    %p59 = por %p57, %p58
    %p60 = scmp.ne.s32.totalorder %s51, %s52
    %p61 = scmp.eq.s32.totalorder %s20, 0
    %p62 = por %p60, %p61
    %p63 = scmp.ne.s32.totalorder %s51, %s52
    %p64 = scmp.eq.s32.totalorder %s21, 2
    %p65 = por %p63, %p64
    %p67 = scmp.ne.s32.totalorder %s52, %s66
    %p68 = scmp.eq.s32.totalorder %s21, 0
    %p69 = por %p67, %p68
    %s71 = sadd.s32 %s70, 1
    %p74 = scmp.eq.s32.totalorder %s15, 2
    %p75 = scmp.ne.s32.totalorder %s70, %s72
    %p76 = scmp.eq.s32.totalorder %s15, 0
    %p77 = por %p75, %p76
    %p78 = scmp.ne.s32.totalorder %s70, %s72
    %p79 = scmp.eq.s32.totalorder %s20, 2
    %p80 = por %p78, %p79
    %p81 = scmp.ne.s32.totalorder %s72, %s73
    %p82 = scmp.eq.s32.totalorder %s20, 0
    %p83 = por %p81, %p82
    %p84 = scmp.ne.s32.totalorder %s72, %s73
    %p85 = scmp.eq.s32.totalorder %s21, 2
    %p86 = por %p84, %p85
    %p88 = scmp.ne.s32.totalorder %s73, %s87
    %p89 = scmp.eq.s32.totalorder %s21, 0
    %p90 = por %p88, %p89
    %s92 = sadd.s32 %s91, 1
    %p95 = scmp.eq.s32.totalorder %s15, 2
    %p96 = scmp.ne.s32.totalorder %s91, %s93
    %p97 = scmp.eq.s32.totalorder %s15, 0
    %p98 = por %p96, %p97
    %p99 = scmp.ne.s32.totalorder %s91, %s93
    %p100 = scmp.eq.s32.totalorder %s20, 2
    %p101 = por %p99, %p100
    %p102 = scmp.ne.s32.totalorder %s93, %s94
    %p103 = scmp.eq.s32.totalorder %s20, 0
    %p104 = por %p102, %p103
    %p105 = scmp.ne.s32.totalorder %s93, %s94
    %p106 = scmp.eq.s32.totalorder %s21, 2
    %p107 = por %p105, %p106
    %p109 = scmp.ne.s32.totalorder %s94, %s108
    %p110 = scmp.eq.s32.totalorder %s21, 0
    %p111 = por %p109, %p110
    %s113 = sadd.s32 %s112, 1
    %p116 = scmp.eq.s32.totalorder %s15, 2
    %p117 = scmp.ne.s32.totalorder %s112, %s114
    %p118 = scmp.eq.s32.totalorder %s15, 0
    %p119 = por %p117, %p118
    %p120 = scmp.ne.s32.totalorder %s112, %s114
    %p121 = scmp.eq.s32.totalorder %s20, 2
    %p122 = por %p120, %p121
    %p123 = scmp.ne.s32.totalorder %s114, %s115
    %p124 = scmp.eq.s32.totalorder %s20, 0
    %p125 = por %p123, %p124
    %p126 = scmp.ne.s32.totalorder %s114, %s115
    %p127 = scmp.eq.s32.totalorder %s21, 2
    %p128 = por %p126, %p127
    %p130 = scmp.ne.s32.totalorder %s115, %s129
    %p131 = scmp.eq.s32.totalorder %s21, 0
    %p132 = por %p130, %p131
    %s134 = sadd.s32 %s133, 1
    %p137 = scmp.eq.s32.totalorder %s15, 2
    %p138 = scmp.ne.s32.totalorder %s133, %s135
    %p139 = scmp.eq.s32.totalorder %s15, 0
    %p140 = por %p138, %p139
    %p141 = scmp.ne.s32.totalorder %s133, %s135
    %p142 = scmp.eq.s32.totalorder %s20, 2
    %p143 = por %p141, %p142
    %p144 = scmp.ne.s32.totalorder %s135, %s136
    %p145 = scmp.eq.s32.totalorder %s20, 0
    %p146 = por %p144, %p145
    %p147 = scmp.ne.s32.totalorder %s135, %s136
    %p148 = scmp.eq.s32.totalorder %s21, 2
    %p149 = por %p147, %p148
    %p151 = scmp.ne.s32.totalorder %s136, %s150
    %p152 = scmp.eq.s32.totalorder %s21, 0
    %p153 = por %p151, %p152
    %s155 = sadd.s32 %s154, 1
    %p158 = scmp.eq.s32.totalorder %s15, 2
    %p159 = scmp.ne.s32.totalorder %s154, %s156
    %p160 = scmp.eq.s32.totalorder %s15, 0
    %p161 = por %p159, %p160
    %p162 = scmp.ne.s32.totalorder %s154, %s156
    %p163 = scmp.eq.s32.totalorder %s20, 2
    %p164 = por %p162, %p163
    %p165 = scmp.ne.s32.totalorder %s156, %s157
    %p166 = scmp.eq.s32.totalorder %s20, 0
    %p167 = por %p165, %p166
    %p168 = scmp.ne.s32.totalorder %s156, %s157
    %p169 = scmp.eq.s32.totalorder %s21, 2
    %p170 = por %p168, %p169
    %p172 = scmp.ne.s32.totalorder %s157, %s171
    %p173 = scmp.eq.s32.totalorder %s21, 0
    %p174 = por %p172, %p173
    %s176 = sadd.s32 %s175, 1
    %p179 = scmp.eq.s32.totalorder %s15, 2
    %p180 = scmp.ne.s32.totalorder %s175, %s177
    %p181 = scmp.eq.s32.totalorder %s15, 0
    %p182 = por %p180, %p181
    %p183 = scmp.ne.s32.totalorder %s175, %s177
    %p184 = scmp.eq.s32.totalorder %s20, 2
    %p185 = por %p183, %p184
    %p186 = scmp.ne.s32.totalorder %s177, %s178
    %p187 = scmp.eq.s32.totalorder %s20, 0
    %p188 = por %p186, %p187
    %p189 = scmp.ne.s32.totalorder %s177, %s178
    %p190 = scmp.eq.s32.totalorder %s21, 2
    %p191 = por %p189, %p190
    %p193 = scmp.ne.s32.totalorder %s178, %s192
    %p194 = scmp.eq.s32.totalorder %s21, 0
    %p195 = por %p193, %p194
    %s197 = sadd.s32 %s196, 1
    %p200 = scmp.eq.s32.totalorder %s15, 2
    %p201 = scmp.ne.s32.totalorder %s196, %s198
    %p202 = scmp.eq.s32.totalorder %s15, 0
    %p203 = por %p201, %p202
    %p204 = scmp.ne.s32.totalorder %s196, %s198
    %p205 = scmp.eq.s32.totalorder %s20, 2
    %p206 = por %p204, %p205
    %p207 = scmp.ne.s32.totalorder %s198, %s199
    %p208 = scmp.eq.s32.totalorder %s20, 0
    %p209 = por %p207, %p208
    %p210 = scmp.ne.s32.totalorder %s198, %s199
    %p211 = scmp.eq.s32.totalorder %s21, 2
    %p212 = por %p210, %p211
    %p214 = scmp.ne.s32.totalorder %s199, %s213
    %p215 = scmp.eq.s32.totalorder %s21, 0
    %p216 = por %p214, %p215
    %s217 = ssub.s32 %s15, %s22
    %p218 = scmp.eq.s32.totalorder %s217, 0
    %s220 = sadd.s32 %s219, 1
    %s221 = scalar_select %p218, %s219, %s220
    %p224 = pneg %p218
    %p225 = scmp.eq.s32.totalorder %s15, 2
    %p226 = por %p224, %p225
    %p227 = scmp.ne.s32.totalorder %s219, %s222
    %p228 = scmp.eq.s32.totalorder %s15, 0
    %p229 = por %p227, %p228
    %p230 = scmp.ne.s32.totalorder %s219, %s222
    %p231 = scmp.eq.s32.totalorder %s20, 2
    %p232 = por %p230, %p231
    %p233 = scmp.ne.s32.totalorder %s222, %s223
    %p234 = scmp.eq.s32.totalorder %s20, 0
    %p235 = por %p233, %p234
    %p236 = scmp.ne.s32.totalorder %s222, %s223
    %p237 = scmp.eq.s32.totalorder %s21, 2
    %p238 = por %p236, %p237
    %p240 = scmp.ne.s32.totalorder %s223, %s239
    %p241 = scmp.eq.s32.totalorder %s21, 0
    %p242 = por %p240, %p241
    %p243 = scmp.le.s32.totalorder 1, %s15
    %p244 = scmp.lt.s32.totalorder %s15, 4
    %p245 = pnand %p243, %p244
    %p246 = pneg %p245
    // Predicated region
    $region9: #{net_forward.1} parent=5 // pred_check
      _
    $region10: #{net_forward.1} parent=5 // pred_check_branch
      %248 = sbr.rel (%p245) target = $region12
    $region11: #{net_forward.1} parent=5 // pred_region
      %s249 = ssub.s32 %s15, 1
      // Predicated region
      $region13: #{net_forward.1} parent=11 // pred_check
        %p250 = pneg %p62
      $region14: #{net_forward.1} parent=11 // pred_check_branch
        %252 = sbr.rel (%p250) target = $region16
      $region15: #{net_forward.1} parent=11 // pred_region
        _
      $region16: #{net_forward.1} parent=11 // pred_fallthru
        _
      // Predicated region
      $region17: #{net_forward.1} parent=11 // pred_check
        %p253 = pneg %p83
      $region18: #{net_forward.1} parent=11 // pred_check_branch
        %255 = sbr.rel (%p253) target = $region20
      $region19: #{net_forward.1} parent=11 // pred_region
        _
      $region20: #{net_forward.1} parent=11 // pred_fallthru
        _
      // Predicated region
      $region21: #{net_forward.1} parent=11 // pred_check
        %p256 = pneg %p104
      $region22: #{net_forward.1} parent=11 // pred_check_branch
        %258 = sbr.rel (%p256) target = $region24
      $region23: #{net_forward.1} parent=11 // pred_region
        _
      $region24: #{net_forward.1} parent=11 // pred_fallthru
        _
      // Predicated region
      $region25: #{net_forward.1} parent=11 // pred_check
        %p259 = pneg %p125
      $region26: #{net_forward.1} parent=11 // pred_check_branch
        %261 = sbr.rel (%p259) target = $region28
      $region27: #{net_forward.1} parent=11 // pred_region
        _
      $region28: #{net_forward.1} parent=11 // pred_fallthru
        _
      // Predicated region
      $region29: #{net_forward.1} parent=11 // pred_check
        %p262 = pneg %p146
      $region30: #{net_forward.1} parent=11 // pred_check_branch
        %264 = sbr.rel (%p262) target = $region32
      $region31: #{net_forward.1} parent=11 // pred_region
        _
      $region32: #{net_forward.1} parent=11 // pred_fallthru
        _
      // Predicated region
      $region33: #{net_forward.1} parent=11 // pred_check
        %p265 = pneg %p167
      $region34: #{net_forward.1} parent=11 // pred_check_branch
        %267 = sbr.rel (%p265) target = $region36
      $region35: #{net_forward.1} parent=11 // pred_region
        _
      $region36: #{net_forward.1} parent=11 // pred_fallthru
        _
      // Predicated region
      $region37: #{net_forward.1} parent=11 // pred_check
        %p268 = pneg %p188
      $region38: #{net_forward.1} parent=11 // pred_check_branch
        %270 = sbr.rel (%p268) target = $region40
      $region39: #{net_forward.1} parent=11 // pred_region
        _
      $region40: #{net_forward.1} parent=11 // pred_fallthru
        _
      // Predicated region
      $region41: #{net_forward.1} parent=11 // pred_check
        %p271 = pneg %p209
      $region42: #{net_forward.1} parent=11 // pred_check_branch
        %273 = sbr.rel (%p271) target = $region44
      $region43: #{net_forward.1} parent=11 // pred_region
        _
      $region44: #{net_forward.1} parent=11 // pred_fallthru
        _
    $region12: #{net_forward.1} parent=5 // pred_fallthru
      _
    %p274 = scmp.lt.s32.totalorder %s15, 3
    // Predicated region
    $region45: #{net_forward.1} parent=5 // pred_check
      %p275 = pneg %p274
    $region46: #{net_forward.1} parent=5 // pred_check_branch
      %277 = sbr.rel (%p275) target = $region48
    $region47: #{net_forward.1} parent=5 // pred_region
      // Predicated region
      $region49: #{net_forward.1} parent=47 // pred_check
        %p278 = pneg %p35
      $region50: #{net_forward.1} parent=47 // pred_check_branch
        %280 = sbr.rel (%p278) target = $region52
      $region51: #{net_forward.1} parent=47 // pred_region
        %s281 = smul.u32 16, %s15
        %p282 = scmp.lt.s32.totalorder %s281, 47
        %s283 = scalar_select %p282, %s281, 47
        %s284 = smul.addr %s283, 7
        %s285 = smul.addr %s284, 4
        %s286 = scalar_lea.vmem %s0, %s285
        %s287 = smul.u32 16, %s15
      $region52: #{net_forward.1} parent=47 // pred_fallthru
        _
    $region48: #{net_forward.1} parent=5 // pred_fallthru
      _
    %p288 = scmp.le.s32.totalorder 1, %s15
    %p289 = scmp.lt.s32.totalorder %s15, 4
    %p290 = pnand %p288, %p289
    %p291 = pneg %p290
    // Predicated region
    $region53: #{net_forward.1} parent=5 // pred_check
      _
    $region54: #{net_forward.1} parent=5 // pred_check_branch
      %293 = sbr.rel (%p290) target = $region56
    $region55: #{net_forward.1} parent=5 // pred_region
      %s294 = ssub.s32 %s15, 1
      %s295 = smul.u32 16, %s20
      %p296 = scmp.lt.s32.totalorder %s295, 47
      %s297 = scalar_select %p296, %s295, 47
      %s298 = smul.addr %s297, 7
      %s299 = smul.addr %s298, 4
      %s300 = scalar_lea.vmem %s0, %s299
      %p301 = pneg %p41
      %p302 = pneg %p38
      %p303 = pneg %p62
      %p304 = pneg %p59
      %p305 = pneg %p83
      %p306 = pneg %p80
      %p307 = pneg %p104
      %p308 = pneg %p101
      %p309 = pneg %p125
      %p310 = pneg %p122
      %p311 = pneg %p146
      %p312 = pneg %p143
      %p313 = pneg %p167
      %p314 = pneg %p164
      %p315 = pneg %p188
      %p316 = pneg %p185
      %p317 = pneg %p209
      %p318 = pneg %p206
      %p319 = pneg %p235
      %p320 = pneg %p232
      %s321 = smul.u32 16, %s20
      %p322 = scmp.lt.s32.totalorder %s321, 47
      %s323 = scalar_select %p322, %s321, 47
      %s324 = smul.addr %s323, 8
      %s325 = scalar_lea.vmem %s9, %s324
      %s326 = smul.u32 16, %s20
      %p327 = scmp.lt.s32.totalorder %s326, 47
      %s328 = scalar_select %p327, %s326, 47
      %s329 = smul.addr %s328, 7
      %s330 = smul.addr %s329, 4
      %s331 = scalar_lea.vmem %s0, %s330
      %s332 = smul.u32 16, %s20
      %s333 = smul.u32 16, %s20
      %p334 = scmp.lt.s32.totalorder %s333, 47
      %s335 = scalar_select %p334, %s333, 47
      %s336 = smul.addr %s335, 8
      %s337 = scalar_lea.vmem %s9, %s336
      %s338 = smul.u32 16, %s20
      %v340 = vld [vmem:[%s331] sm:$0xff]
      %v341 = vld [vmem:[%s331 + $0x8] sm:$0xff]
      %v342 = vld [vmem:[%s331 + $0x10] sm:$0xff]
      %v343 = vld [vmem:[%s331 + $0x18] sm:$0xf]
      %v344 = vld [vmem:[%s331 + $0x1c] sm:$0xff]
      %v345 = vld [vmem:[%s331 + $0x24] sm:$0xff]
      %v346 = vld [vmem:[%s331 + $0x2c] sm:$0xff]
      %v347 = vld [vmem:[%s331 + $0x34] sm:$0xf]
      %v348 = vld [vmem:[%s331 + $0x38] sm:$0xff]
      %v349 = vld [vmem:[%s331 + $0x40] sm:$0xff]
      %v350 = vld [vmem:[%s331 + $0x48] sm:$0xff]
      %v351 = vld [vmem:[%s331 + $0x50] sm:$0xf]
      %v352 = vld [vmem:[%s331 + $0x54] sm:$0xff]
      %v353 = vld [vmem:[%s331 + $0x5c] sm:$0xff]
      %v354 = vld [vmem:[%s331 + $0x64] sm:$0xff]
      %v355 = vld [vmem:[%s331 + $0x6c] sm:$0xf]
      %v356 = vld [vmem:[%s331 + $0x70] sm:$0xff]
      %v357 = vld [vmem:[%s331 + $0x78] sm:$0xff]
      %v358 = vld [vmem:[%s331 + $0x80] sm:$0xff]
      %v359 = vld [vmem:[%s331 + $0x88] sm:$0xf]
      %v360 = vld [vmem:[%s331 + $0x8c] sm:$0xff]
      %v361 = vld [vmem:[%s331 + $0x94] sm:$0xff]
      %v362 = vld [vmem:[%s331 + $0x9c] sm:$0xff]
      %v363 = vld [vmem:[%s331 + $0xa4] sm:$0xf]
      %v364 = vld [vmem:[%s331 + $0xa8] sm:$0xff]
      %v365 = vld [vmem:[%s331 + $0xb0] sm:$0xff]
      %v366 = vld [vmem:[%s331 + $0xb8] sm:$0xff]
      %v367 = vld [vmem:[%s331 + $0xc0] sm:$0xf]
      %v368 = vld [vmem:[%s331 + $0xc4] sm:$0xff]
      %v369 = vld [vmem:[%s331 + $0xcc] sm:$0xff]
      %v370 = vld [vmem:[%s331 + $0xd4] sm:$0xff]
      %v371 = vld [vmem:[%s331 + $0xdc] sm:$0xf]
      %v372 = vld [vmem:[%s331 + $0xe0] sm:$0xff]
      %v373 = vld [vmem:[%s331 + $0xe8] sm:$0xff]
      %v374 = vld [vmem:[%s331 + $0xf0] sm:$0xff]
      %v375 = vld [vmem:[%s331 + $0xf8] sm:$0xf]
      %v376 = vld [vmem:[%s331 + $0xfc] sm:$0xff]
      %v377 = vld [vmem:[%s331 + $0x104] sm:$0xff]
      %v378 = vld [vmem:[%s331 + $0x10c] sm:$0xff]
      %v379 = vld [vmem:[%s331 + $0x114] sm:$0xf]
      %v380 = vld [vmem:[%s331 + $0x118] sm:$0xff]
      %v381 = vld [vmem:[%s331 + $0x120] sm:$0xff]
      %v382 = vld [vmem:[%s331 + $0x128] sm:$0xff]
      %v383 = vld [vmem:[%s331 + $0x130] sm:$0xf]
      %v384 = vld [vmem:[%s331 + $0x134] sm:$0xff]
      %v385 = vld [vmem:[%s331 + $0x13c] sm:$0xff]
      %v386 = vld [vmem:[%s331 + $0x144] sm:$0xff]
      %v387 = vld [vmem:[%s331 + $0x14c] sm:$0xf]
      %v388 = vld [vmem:[%s331 + $0x150] sm:$0xff]
      %v389 = vld [vmem:[%s331 + $0x158] sm:$0xff]
      %v390 = vld [vmem:[%s331 + $0x160] sm:$0xff]
      %v391 = vld [vmem:[%s331 + $0x168] sm:$0xf]
      %v392 = vld [vmem:[%s331 + $0x16c] sm:$0xff]
      %v393 = vld [vmem:[%s331 + $0x174] sm:$0xff]
      %v394 = vld [vmem:[%s331 + $0x17c] sm:$0xff]
      %v395 = vld [vmem:[%s331 + $0x184] sm:$0xf]
      %v396 = vld [vmem:[%s331 + $0x188] sm:$0xff]
      %v397 = vld [vmem:[%s331 + $0x190] sm:$0xff]
      %v398 = vld [vmem:[%s331 + $0x198] sm:$0xff]
      %v399 = vld [vmem:[%s331 + $0x1a0] sm:$0xf]
      %v400 = vld [vmem:[%s331 + $0x1a4] sm:$0xff]
      %v401 = vld [vmem:[%s331 + $0x1ac] sm:$0xff]
      %v402 = vld [vmem:[%s331 + $0x1b4] sm:$0xff]
      %v403 = vld [vmem:[%s331 + $0x1bc] sm:$0xf]
      %v404 = vld [vmem:[%s1] sm:$0xf]
      %v405 = vld [vmem:[%s1 + $0x4] sm:$0xf]
      %v406 = vld [vmem:[%s1 + $0x8] sm:$0xf]
      %v407 = vld [vmem:[%s1 + $0xc] sm:$0xf]
      %v408 = vld [vmem:[%s1 + $0x10] sm:$0xf]
      %v409 = vld [vmem:[%s1 + $0x14] sm:$0xf]
      %v410 = vld [vmem:[%s1 + $0x18] sm:$0xf]
      %v411 = vld [vmem:[%s1 + $0x1c] sm:$0xf]
      %v412 = vld [vmem:[%s1 + $0x20] sm:$0xf]
      %v413 = vld [vmem:[%s1 + $0x24] sm:$0xf]
      %v414 = vld [vmem:[%s1 + $0x28] sm:$0xf]
      %v415 = vld [vmem:[%s1 + $0x2c] sm:$0xf]
      %v416 = vld [vmem:[%s1 + $0x30] sm:$0xf]
      %v417 = vld [vmem:[%s1 + $0x34] sm:$0xf]
      %v418 = vld [vmem:[%s1 + $0x38] sm:$0xf]
      %v419 = vld [vmem:[%s1 + $0x3c] sm:$0xf]
      %v420 = vld [vmem:[%s1 + $0x40] sm:$0xf]
      %v421 = vld [vmem:[%s1 + $0x44] sm:$0xf]
      %v422 = vld [vmem:[%s1 + $0x48] sm:$0xf]
      %v423 = vld [vmem:[%s1 + $0x4c] sm:$0xf]
      %v424 = vld [vmem:[%s1 + $0x50] sm:$0xf]
      %v425 = vld [vmem:[%s1 + $0x54] sm:$0xf]
      %v426 = vld [vmem:[%s1 + $0x58] sm:$0xf]
      %v427 = vld [vmem:[%s1 + $0x5c] sm:$0xf]
      %v428 = vld [vmem:[%s1 + $0x60] sm:$0xf]
      %v429 = vld [vmem:[%s1 + $0x64] sm:$0xf]
      %v430 = vld [vmem:[%s1 + $0x68] sm:$0xf]
      %v431 = vld [vmem:[%s1 + $0x6c] sm:$0xf]
      %v432 = vld [vmem:[%s1 + $0x70] sm:$0xf]
      %v433 = vld [vmem:[%s1 + $0x74] sm:$0xf]
      %v434 = vld [vmem:[%s1 + $0x78] sm:$0xf]
      %v435 = vld [vmem:[%s1 + $0x7c] sm:$0xf]
      %v436 = vld [vmem:[%s1 + $0x80] sm:$0xf]
      %v437 = vld [vmem:[%s1 + $0x84] sm:$0xf]
      %v438 = vld [vmem:[%s1 + $0x88] sm:$0xf]
      %v439 = vld [vmem:[%s1 + $0x8c] sm:$0xf]
      %v440 = vld [vmem:[%s1 + $0x90] sm:$0xf]
      %v441 = vld [vmem:[%s1 + $0x94] sm:$0xf]
      %v442 = vld [vmem:[%s1 + $0x98] sm:$0xf]
      %v443 = vld [vmem:[%s1 + $0x9c] sm:$0xf]
      %v444 = vld [vmem:[%s1 + $0xa0] sm:$0xf]
      %v445 = vld [vmem:[%s1 + $0xa4] sm:$0xf]
      %v446 = vld [vmem:[%s1 + $0xa8] sm:$0xf]
      %v447 = vld [vmem:[%s1 + $0xac] sm:$0xf]
      %v448 = vld [vmem:[%s1 + $0xb0] sm:$0xf]
      %v449 = vld [vmem:[%s1 + $0xb4] sm:$0xf]
      %v450 = vld [vmem:[%s1 + $0xb8] sm:$0xf]
      %v451 = vld [vmem:[%s1 + $0xbc] sm:$0xf]
      %v452 = vld [vmem:[%s1 + $0xc0] sm:$0xf]
      %v453 = vld [vmem:[%s1 + $0xc4] sm:$0xf]
      %v454 = vld [vmem:[%s1 + $0xc8] sm:$0xf]
      %v455 = vld [vmem:[%s1 + $0xcc] sm:$0xf]
      %v456 = vld [vmem:[%s1 + $0xd0] sm:$0xf]
      %v457 = vld [vmem:[%s1 + $0xd4] sm:$0xf]
      %v458 = vld [vmem:[%s1 + $0xd8] sm:$0xf]
      %v459 = vld [vmem:[%s1 + $0xdc] sm:$0xf]
      %v460 = vld [vmem:[%s1 + $0xe0] sm:$0xf]
      %v461 = vld [vmem:[%s1 + $0xe4] sm:$0xf]
      %v462 = vld [vmem:[%s1 + $0xe8] sm:$0xf]
      %v463 = vld [vmem:[%s1 + $0xec] sm:$0xf]
      %v464 = vld [vmem:[%s1 + $0xf0] sm:$0xf]
      %v465 = vld [vmem:[%s1 + $0xf4] sm:$0xf]
      %v466 = vld [vmem:[%s1 + $0xf8] sm:$0xf]
      %v467 = vld [vmem:[%s1 + $0xfc] sm:$0xf]
      %v468 = vld [vmem:[%s1 + $0x100] sm:$0xf]
      %v469 = vld [vmem:[%s1 + $0x104] sm:$0xf]
      %v470 = vld [vmem:[%s1 + $0x108] sm:$0xf]
      %v471 = vld [vmem:[%s1 + $0x10c] sm:$0xf]
      %v472 = vld [vmem:[%s1 + $0x110] sm:$0xf]
      %v473 = vld [vmem:[%s1 + $0x114] sm:$0xf]
      %v474 = vld [vmem:[%s1 + $0x118] sm:$0xf]
      %v475 = vld [vmem:[%s1 + $0x11c] sm:$0xf]
      %v476 = vld [vmem:[%s1 + $0x120] sm:$0xf]
      %v477 = vld [vmem:[%s1 + $0x124] sm:$0xf]
      %v478 = vld [vmem:[%s1 + $0x128] sm:$0xf]
      %v479 = vld [vmem:[%s1 + $0x12c] sm:$0xf]
      %v480 = vld [vmem:[%s1 + $0x130] sm:$0xf]
      %v481 = vld [vmem:[%s1 + $0x134] sm:$0xf]
      %v482 = vld [vmem:[%s1 + $0x138] sm:$0xf]
      %v483 = vld [vmem:[%s1 + $0x13c] sm:$0xf]
      %v484 = vld [vmem:[%s1 + $0x140] sm:$0xf]
      %v485 = vld [vmem:[%s1 + $0x144] sm:$0xf]
      %v486 = vld [vmem:[%s1 + $0x148] sm:$0xf]
      %v487 = vld [vmem:[%s1 + $0x14c] sm:$0xf]
      %v488 = vld [vmem:[%s1 + $0x150] sm:$0xf]
      %v489 = vld [vmem:[%s1 + $0x154] sm:$0xf]
      %v490 = vld [vmem:[%s1 + $0x158] sm:$0xf]
      %v491 = vld [vmem:[%s1 + $0x15c] sm:$0xf]
      %v492 = vld [vmem:[%s1 + $0x160] sm:$0xf]
      %v493 = vld [vmem:[%s1 + $0x164] sm:$0xf]
      %v494 = vld [vmem:[%s1 + $0x168] sm:$0xf]
      %v495 = vld [vmem:[%s1 + $0x16c] sm:$0xf]
      %v496 = vld [vmem:[%s1 + $0x170] sm:$0xf]
      %v497 = vld [vmem:[%s1 + $0x174] sm:$0xf]
      %v498 = vld [vmem:[%s1 + $0x178] sm:$0xf]
      %v499 = vld [vmem:[%s1 + $0x17c] sm:$0xf]
      %v500 = vld [vmem:[%s1 + $0x180] sm:$0xf]
      %v501 = vld [vmem:[%s1 + $0x184] sm:$0xf]
      %v502 = vld [vmem:[%s2] sm:$0x1]
      %v504 = vlaneseq
      %v505 = vshrl.u32 %v504, 7
      %v506 = vsub.s32 0, %v505
      %v507 = vrot.slane %v502, %v506
      %v573 = vunpack.c.l.b16 %v340
      %v574 = vunpack.c.h.b16 %v340
      %v575 = vunpack.c.l.b16 %v341
      %v576 = vunpack.c.h.b16 %v341
      %v577 = vunpack.c.l.b16 %v342
      %v578 = vunpack.c.h.b16 %v342
      %v579 = vunpack.c.l.b16 %v343
      %v580 = vunpack.c.l.b16 %v344
      %v581 = vunpack.c.h.b16 %v344
      %v582 = vunpack.c.l.b16 %v345
      %v583 = vunpack.c.h.b16 %v345
      %v584 = vunpack.c.l.b16 %v346
      %v585 = vunpack.c.h.b16 %v346
      %v586 = vunpack.c.l.b16 %v347
      %v587 = vunpack.c.l.b16 %v348
      %v588 = vunpack.c.h.b16 %v348
      %v589 = vunpack.c.l.b16 %v349
      %v590 = vunpack.c.h.b16 %v349
      %v591 = vunpack.c.l.b16 %v350
      %v592 = vunpack.c.h.b16 %v350
      %v593 = vunpack.c.l.b16 %v351
      %v594 = vunpack.c.l.b16 %v352
      %v595 = vunpack.c.h.b16 %v352
      %v596 = vunpack.c.l.b16 %v353
      %v597 = vunpack.c.h.b16 %v353
      %v598 = vunpack.c.l.b16 %v354
      %v599 = vunpack.c.h.b16 %v354
      %v600 = vunpack.c.l.b16 %v355
      %v601 = vunpack.c.l.b16 %v356
      %v602 = vunpack.c.h.b16 %v356
      %v603 = vunpack.c.l.b16 %v357
      %v604 = vunpack.c.h.b16 %v357
      %v605 = vunpack.c.l.b16 %v358
      %v606 = vunpack.c.h.b16 %v358
      %v607 = vunpack.c.l.b16 %v359
      %v608 = vunpack.c.l.b16 %v360
      %v609 = vunpack.c.h.b16 %v360
      %v610 = vunpack.c.l.b16 %v361
      %v611 = vunpack.c.h.b16 %v361
      %v612 = vunpack.c.l.b16 %v362
      %v613 = vunpack.c.h.b16 %v362
      %v614 = vunpack.c.l.b16 %v363
      %v615 = vunpack.c.l.b16 %v364
      %v616 = vunpack.c.h.b16 %v364
      %v617 = vunpack.c.l.b16 %v365
      %v618 = vunpack.c.h.b16 %v365
      %v619 = vunpack.c.l.b16 %v366
      %v620 = vunpack.c.h.b16 %v366
      %v621 = vunpack.c.l.b16 %v367
      %v622 = vunpack.c.l.b16 %v368
      %v623 = vunpack.c.h.b16 %v368
      %v624 = vunpack.c.l.b16 %v369
      %v625 = vunpack.c.h.b16 %v369
      %v626 = vunpack.c.l.b16 %v370
      %v627 = vunpack.c.h.b16 %v370
      %v628 = vunpack.c.l.b16 %v371
      %v629 = vunpack.c.l.b16 %v372
      %v630 = vunpack.c.h.b16 %v372
      %v631 = vunpack.c.l.b16 %v373
      %v632 = vunpack.c.h.b16 %v373
      %v633 = vunpack.c.l.b16 %v374
      %v634 = vunpack.c.h.b16 %v374
      %v635 = vunpack.c.l.b16 %v375
      %v636 = vunpack.c.l.b16 %v376
      %v637 = vunpack.c.h.b16 %v376
      %v638 = vunpack.c.l.b16 %v377
      %v639 = vunpack.c.h.b16 %v377
      %v640 = vunpack.c.l.b16 %v378
      %v641 = vunpack.c.h.b16 %v378
      %v642 = vunpack.c.l.b16 %v379
      %v643 = vunpack.c.l.b16 %v380
      %v644 = vunpack.c.h.b16 %v380
      %v645 = vunpack.c.l.b16 %v381
      %v646 = vunpack.c.h.b16 %v381
      %v647 = vunpack.c.l.b16 %v382
      %v648 = vunpack.c.h.b16 %v382
      %v649 = vunpack.c.l.b16 %v383
      %v650 = vunpack.c.l.b16 %v384
      %v651 = vunpack.c.h.b16 %v384
      %v652 = vunpack.c.l.b16 %v385
      %v653 = vunpack.c.h.b16 %v385
      %v654 = vunpack.c.l.b16 %v386
      %v655 = vunpack.c.h.b16 %v386
      %v656 = vunpack.c.l.b16 %v387
      %v657 = vunpack.c.l.b16 %v388
      %v658 = vunpack.c.h.b16 %v388
      %v659 = vunpack.c.l.b16 %v389
      %v660 = vunpack.c.h.b16 %v389
      %v661 = vunpack.c.l.b16 %v390
      %v662 = vunpack.c.h.b16 %v390
      %v663 = vunpack.c.l.b16 %v391
      %v664 = vunpack.c.l.b16 %v392
      %v665 = vunpack.c.h.b16 %v392
      %v666 = vunpack.c.l.b16 %v393
      %v667 = vunpack.c.h.b16 %v393
      %v668 = vunpack.c.l.b16 %v394
      %v669 = vunpack.c.h.b16 %v394
      %v670 = vunpack.c.l.b16 %v395
      %v671 = vunpack.c.l.b16 %v396
      %v672 = vunpack.c.h.b16 %v396
      %v673 = vunpack.c.l.b16 %v397
      %v674 = vunpack.c.h.b16 %v397
      %v675 = vunpack.c.l.b16 %v398
      %v676 = vunpack.c.h.b16 %v398
      %v677 = vunpack.c.l.b16 %v399
      %v678 = vunpack.c.l.b16 %v400
      %v679 = vunpack.c.h.b16 %v400
      %v680 = vunpack.c.l.b16 %v401
      %v681 = vunpack.c.h.b16 %v401
      %v682 = vunpack.c.l.b16 %v402
      %v683 = vunpack.c.h.b16 %v402
      %v684 = vunpack.c.l.b16 %v403
      %v685 = vpack.c.b16 %v580, %v573
      %v686 = vpack.c.b16 %v581, %v574
      %v687 = vpack.c.b16 %v582, %v575
      %v688 = vpack.c.b16 %v583, %v576
      %v689 = vpack.c.b16 %v584, %v577
      %v690 = vpack.c.b16 %v585, %v578
      %v691 = vpack.c.b16 %v586, %v579
      %v692 = vpack.c.b16 %v594, %v587
      %v693 = vpack.c.b16 %v595, %v588
      %v694 = vpack.c.b16 %v596, %v589
      %v695 = vpack.c.b16 %v597, %v590
      %v696 = vpack.c.b16 %v598, %v591
      %v697 = vpack.c.b16 %v599, %v592
      %v698 = vpack.c.b16 %v600, %v593
      %v699 = vpack.c.b16 %v608, %v601
      %v700 = vpack.c.b16 %v609, %v602
      %v701 = vpack.c.b16 %v610, %v603
      %v702 = vpack.c.b16 %v611, %v604
      %v703 = vpack.c.b16 %v612, %v605
      %v704 = vpack.c.b16 %v613, %v606
      %v705 = vpack.c.b16 %v614, %v607
      %v706 = vpack.c.b16 %v622, %v615
      %v707 = vpack.c.b16 %v623, %v616
      %v708 = vpack.c.b16 %v624, %v617
      %v709 = vpack.c.b16 %v625, %v618
      %v710 = vpack.c.b16 %v626, %v619
      %v711 = vpack.c.b16 %v627, %v620
      %v712 = vpack.c.b16 %v628, %v621
      %v713 = vpack.c.b16 %v636, %v629
      %v714 = vpack.c.b16 %v637, %v630
      %v715 = vpack.c.b16 %v638, %v631
      %v716 = vpack.c.b16 %v639, %v632
      %v717 = vpack.c.b16 %v640, %v633
      %v718 = vpack.c.b16 %v641, %v634
      %v719 = vpack.c.b16 %v642, %v635
      %v720 = vpack.c.b16 %v650, %v643
      %v721 = vpack.c.b16 %v651, %v644
      %v722 = vpack.c.b16 %v652, %v645
      %v723 = vpack.c.b16 %v653, %v646
      %v724 = vpack.c.b16 %v654, %v647
      %v725 = vpack.c.b16 %v655, %v648
      %v726 = vpack.c.b16 %v656, %v649
      %v727 = vpack.c.b16 %v664, %v657
      %v728 = vpack.c.b16 %v665, %v658
      %v729 = vpack.c.b16 %v666, %v659
      %v730 = vpack.c.b16 %v667, %v660
      %v731 = vpack.c.b16 %v668, %v661
      %v732 = vpack.c.b16 %v669, %v662
      %v733 = vpack.c.b16 %v670, %v663
      %v734 = vpack.c.b16 %v678, %v671
      %v735 = vpack.c.b16 %v679, %v672
      %v736 = vpack.c.b16 %v680, %v673
      %v737 = vpack.c.b16 %v681, %v674
      %v738 = vpack.c.b16 %v682, %v675
      %v739 = vpack.c.b16 %v683, %v676
      %v740 = vpack.c.b16 %v684, %v677
      %v887 = vunpack.c.l.b16 %v404
      %v888 = vunpack.c.l.b16 %v405
      %v889 = vunpack.c.l.b16 %v406
      %v890 = vunpack.c.l.b16 %v407
      %v891 = vunpack.c.l.b16 %v408
      %v892 = vunpack.c.l.b16 %v409
      %v893 = vunpack.c.l.b16 %v410
      %v894 = vunpack.c.l.b16 %v411
      %v895 = vunpack.c.l.b16 %v412
      %v896 = vunpack.c.l.b16 %v413
      %v897 = vunpack.c.l.b16 %v414
      %v898 = vunpack.c.l.b16 %v415
      %v899 = vunpack.c.l.b16 %v416
      %v900 = vunpack.c.l.b16 %v417
      %v901 = vunpack.c.l.b16 %v418
      %v902 = vunpack.c.l.b16 %v419
      %v903 = vunpack.c.l.b16 %v420
      %v904 = vunpack.c.l.b16 %v421
      %v905 = vunpack.c.l.b16 %v422
      %v906 = vunpack.c.l.b16 %v423
      %v907 = vunpack.c.l.b16 %v424
      %v908 = vunpack.c.l.b16 %v425
      %v909 = vunpack.c.l.b16 %v426
      %v910 = vunpack.c.l.b16 %v427
      %v911 = vunpack.c.l.b16 %v428
      %v912 = vunpack.c.l.b16 %v429
      %v913 = vunpack.c.l.b16 %v430
      %v914 = vunpack.c.l.b16 %v431
      %v915 = vunpack.c.l.b16 %v432
      %v916 = vunpack.c.l.b16 %v433
      %v917 = vunpack.c.l.b16 %v434
      %v918 = vunpack.c.l.b16 %v435
      %v919 = vunpack.c.l.b16 %v436
      %v920 = vunpack.c.l.b16 %v437
      %v921 = vunpack.c.l.b16 %v438
      %v922 = vunpack.c.l.b16 %v439
      %v923 = vunpack.c.l.b16 %v440
      %v924 = vunpack.c.l.b16 %v441
      %v925 = vunpack.c.l.b16 %v442
      %v926 = vunpack.c.l.b16 %v443
      %v927 = vunpack.c.l.b16 %v444
      %v928 = vunpack.c.l.b16 %v445
      %v929 = vunpack.c.l.b16 %v446
      %v930 = vunpack.c.l.b16 %v447
      %v931 = vunpack.c.l.b16 %v448
      %v932 = vunpack.c.l.b16 %v449
      %v933 = vunpack.c.l.b16 %v450
      %v934 = vunpack.c.l.b16 %v451
      %v935 = vunpack.c.l.b16 %v452
      %v936 = vunpack.c.l.b16 %v453
      %v937 = vunpack.c.l.b16 %v454
      %v938 = vunpack.c.l.b16 %v455
      %v939 = vunpack.c.l.b16 %v456
      %v940 = vunpack.c.l.b16 %v457
      %v941 = vunpack.c.l.b16 %v458
      %v942 = vunpack.c.l.b16 %v459
      %v943 = vunpack.c.l.b16 %v460
      %v944 = vunpack.c.l.b16 %v461
      %v945 = vunpack.c.l.b16 %v462
      %v946 = vunpack.c.l.b16 %v463
      %v947 = vunpack.c.l.b16 %v464
      %v948 = vunpack.c.l.b16 %v465
      %v949 = vunpack.c.l.b16 %v466
      %v950 = vunpack.c.l.b16 %v467
      %v951 = vunpack.c.l.b16 %v468
      %v952 = vunpack.c.l.b16 %v469
      %v953 = vunpack.c.l.b16 %v470
      %v954 = vunpack.c.l.b16 %v471
      %v955 = vunpack.c.l.b16 %v472
      %v956 = vunpack.c.l.b16 %v473
      %v957 = vunpack.c.l.b16 %v474
      %v958 = vunpack.c.l.b16 %v475
      %v959 = vunpack.c.l.b16 %v476
      %v960 = vunpack.c.l.b16 %v477
      %v961 = vunpack.c.l.b16 %v478
      %v962 = vunpack.c.l.b16 %v479
      %v963 = vunpack.c.l.b16 %v480
      %v964 = vunpack.c.l.b16 %v481
      %v965 = vunpack.c.l.b16 %v482
      %v966 = vunpack.c.l.b16 %v483
      %v967 = vunpack.c.l.b16 %v484
      %v968 = vunpack.c.l.b16 %v485
      %v969 = vunpack.c.l.b16 %v486
      %v970 = vunpack.c.l.b16 %v487
      %v971 = vunpack.c.l.b16 %v488
      %v972 = vunpack.c.l.b16 %v489
      %v973 = vunpack.c.l.b16 %v490
      %v974 = vunpack.c.l.b16 %v491
      %v975 = vunpack.c.l.b16 %v492
      %v976 = vunpack.c.l.b16 %v493
      %v977 = vunpack.c.l.b16 %v494
      %v978 = vunpack.c.l.b16 %v495
      %v979 = vunpack.c.l.b16 %v496
      %v980 = vunpack.c.l.b16 %v497
      %v981 = vunpack.c.l.b16 %v498
      %v982 = vunpack.c.l.b16 %v499
      %v983 = vunpack.c.l.b16 %v500
      %v984 = vunpack.c.l.b16 %v501
      %v985 = vpack.c.b16 %v888, %v887
      %v986 = vpack.c.b16 %v890, %v889
      %v987 = vpack.c.b16 %v892, %v891
      %v988 = vpack.c.b16 %v894, %v893
      %v989 = vpack.c.b16 %v896, %v895
      %v990 = vpack.c.b16 %v898, %v897
      %v991 = vpack.c.b16 %v900, %v899
      %v992 = vpack.c.b16 %v902, %v901
      %v993 = vpack.c.b16 %v904, %v903
      %v994 = vpack.c.b16 %v906, %v905
      %v995 = vpack.c.b16 %v908, %v907
      %v996 = vpack.c.b16 %v910, %v909
      %v997 = vpack.c.b16 %v912, %v911
      %v998 = vpack.c.b16 %v914, %v913
      %v999 = vpack.c.b16 %v916, %v915
      %v1000 = vpack.c.b16 %v918, %v917
      %v1001 = vpack.c.b16 %v920, %v919
      %v1002 = vpack.c.b16 %v922, %v921
      %v1003 = vpack.c.b16 %v924, %v923
      %v1004 = vpack.c.b16 %v926, %v925
      %v1005 = vpack.c.b16 %v928, %v927
      %v1006 = vpack.c.b16 %v930, %v929
      %v1007 = vpack.c.b16 %v932, %v931
      %v1008 = vpack.c.b16 %v934, %v933
      %v1009 = vpack.c.b16 %v936, %v935
      %v1010 = vpack.c.b16 %v938, %v937
      %v1011 = vpack.c.b16 %v940, %v939
      %v1012 = vpack.c.b16 %v942, %v941
      %v1013 = vpack.c.b16 %v944, %v943
      %v1014 = vpack.c.b16 %v946, %v945
      %v1015 = vpack.c.b16 %v948, %v947
      %v1016 = vpack.c.b16 %v950, %v949
      %v1017 = vpack.c.b16 %v952, %v951
      %v1018 = vpack.c.b16 %v954, %v953
      %v1019 = vpack.c.b16 %v956, %v955
      %v1020 = vpack.c.b16 %v958, %v957
      %v1021 = vpack.c.b16 %v960, %v959
      %v1022 = vpack.c.b16 %v962, %v961
      %v1023 = vpack.c.b16 %v964, %v963
      %v1024 = vpack.c.b16 %v966, %v965
      %v1025 = vpack.c.b16 %v968, %v967
      %v1026 = vpack.c.b16 %v970, %v969
      %v1027 = vpack.c.b16 %v972, %v971
      %v1028 = vpack.c.b16 %v974, %v973
      %v1029 = vpack.c.b16 %v976, %v975
      %v1030 = vpack.c.b16 %v978, %v977
      %v1031 = vpack.c.b16 %v980, %v979
      %v1032 = vpack.c.b16 %v982, %v981
      %v1033 = vpack.c.b16 %v984, %v983
      %vm1083 = vcmask 130048
      %v1085 = vsel %vm1083, %v691, 0
      %v1088 = vsel %vm1083, %v698, 0
      %v1091 = vsel %vm1083, %v705, 0
      %v1094 = vsel %vm1083, %v712, 0
      %v1097 = vsel %vm1083, %v719, 0
      %v1100 = vsel %vm1083, %v726, 0
      %v1103 = vsel %vm1083, %v733, 0
      %v1106 = vsel %vm1083, %v740, 0
      %1108 = vmatprep.subr.bf16.mxu0 0
      %1109 = vmatpush1.bf16.msra.mxu0 %v985
      %1110 = vmatprep.subr.bf16.mxu0 0
      %1111 = vmatpush1.bf16.msra.mxu0 %v986
      %1112 = vmatprep.subr.bf16.mxu0 0
      %1113 = vmatpush1.bf16.msra.mxu0 %v987
      %1114 = vmatprep.subr.bf16.mxu0 0
      %1115 = vmatpush1.bf16.msra.mxu0 %v988
      %1116 = vmatprep.subr.bf16.mxu0 0
      %1117 = vmatpush1.bf16.msra.mxu0 %v989
      %1118 = vmatprep.subr.bf16.mxu0 0
      %1119 = vmatpush1.bf16.msra.mxu0 %v990
      %1120 = vmatprep.subr.bf16.mxu0 0
      %1121 = vmatpush1.bf16.msra.mxu0 %v991
      %1122 = vmatprep.subr.bf16.mxu0 0
      %1123 = vmatpush1.bf16.msra.mxu0 %v992
      %1124 = vmatprep.subr.bf16.mxu0 0
      %1125 = vmatpush1.bf16.msra.mxu0 %v993
      %1126 = vmatprep.subr.bf16.mxu0 0
      %1127 = vmatpush1.bf16.msra.mxu0 %v994
      %1128 = vmatprep.subr.bf16.mxu0 0
      %1129 = vmatpush1.bf16.msra.mxu0 %v995
      %1130 = vmatprep.subr.bf16.mxu0 0
      %1131 = vmatpush1.bf16.msra.mxu0 %v996
      %1132 = vmatprep.subr.bf16.mxu0 0
      %1133 = vmatpush1.bf16.msra.mxu0 %v997
      %1134 = vmatprep.subr.bf16.mxu0 0
      %1135 = vmatpush1.bf16.msra.mxu0 %v998
      %1136 = vmatprep.subr.bf16.mxu0 0
      %1137 = vmatpush1.bf16.msra.mxu0 %v999
      %1138 = vmatprep.subr.bf16.mxu0 0
      %1139 = vmatpush1.bf16.msra.mxu0 %v1000
      %1140 = vmatprep.mubr.bf16.mxu0 %v686
      %1141 = vmatmul.mubr.bf16.gmra.mrb[0].mxu0 %v685
      %v1142 = vpop.f32.mrb[0].mxu0
      %v1143 = vadd.f32 %v507, %v1142
      %v1144 = vpop.f32.mrb[0].mxu0
      %v1145 = vpop.f32.mrb[0].mxu0
      %v1146 = vadd.f32 %v507, %v1145
      %v1147 = vpop.f32.mrb[0].mxu0
      %1148 = vmatprep.mubr.bf16.mxu0 %v693
      %1149 = vmatmul.mubr.bf16.gmra.mrb[0].mxu0 %v692
      %v1150 = vpop.f32.mrb[0].mxu0
      %v1151 = vadd.f32 %v507, %v1150
      %v1152 = vpop.f32.mrb[0].mxu0
      %v1153 = vpop.f32.mrb[0].mxu0
      %v1154 = vadd.f32 %v507, %v1153
      %v1155 = vpop.f32.mrb[0].mxu0
      %1156 = vmatprep.mubr.bf16.mxu0 %v700
      %1157 = vmatmul.mubr.bf16.gmra.mrb[0].mxu0 %v699
      %v1158 = vpop.f32.mrb[0].mxu0
      %v1159 = vadd.f32 %v507, %v1158
      %v1160 = vpop.f32.mrb[0].mxu0
      %v1161 = vpop.f32.mrb[0].mxu0
      %v1162 = vadd.f32 %v507, %v1161
      %v1163 = vpop.f32.mrb[0].mxu0
      %1164 = vmatprep.mubr.bf16.mxu0 %v707
      %1165 = vmatmul.mubr.bf16.gmra.mrb[0].mxu0 %v706
      %v1166 = vpop.f32.mrb[0].mxu0
      %v1167 = vadd.f32 %v507, %v1166
      %v1168 = vpop.f32.mrb[0].mxu0
      %v1169 = vpop.f32.mrb[0].mxu0
      %v1170 = vadd.f32 %v507, %v1169
      %v1171 = vpop.f32.mrb[0].mxu0
      %1172 = vmatprep.mubr.bf16.mxu0 %v714
      %1173 = vmatmul.mubr.bf16.gmra.mrb[0].mxu0 %v713
      %v1174 = vpop.f32.mrb[0].mxu0
      %v1175 = vadd.f32 %v507, %v1174
      %v1176 = vpop.f32.mrb[0].mxu0
      %v1177 = vpop.f32.mrb[0].mxu0
      %v1178 = vadd.f32 %v507, %v1177
      %v1179 = vpop.f32.mrb[0].mxu0
      %1180 = vmatprep.mubr.bf16.mxu0 %v721
      %1181 = vmatmul.mubr.bf16.gmra.mrb[0].mxu0 %v720
      %v1182 = vpop.f32.mrb[0].mxu0
      %v1183 = vadd.f32 %v507, %v1182
      %v1184 = vpop.f32.mrb[0].mxu0
      %v1185 = vpop.f32.mrb[0].mxu0
      %v1186 = vadd.f32 %v507, %v1185
      %v1187 = vpop.f32.mrb[0].mxu0
      %1188 = vmatprep.mubr.bf16.mxu0 %v728
      %1189 = vmatmul.mubr.bf16.gmra.mrb[0].mxu0 %v727
      %v1190 = vpop.f32.mrb[0].mxu0
      %v1191 = vadd.f32 %v507, %v1190
      %v1192 = vpop.f32.mrb[0].mxu0
      %v1193 = vpop.f32.mrb[0].mxu0
      %v1194 = vadd.f32 %v507, %v1193
      %v1195 = vpop.f32.mrb[0].mxu0
      %1196 = vmatprep.mubr.bf16.mxu0 %v735
      %1197 = vmatmul.mubr.bf16.gmra.mrb[0].mxu0 %v734
      %v1198 = vpop.f32.mrb[0].mxu0
      %v1199 = vadd.f32 %v507, %v1198
      %v1200 = vpop.f32.mrb[0].mxu0
      %v1201 = vpop.f32.mrb[0].mxu0
      %v1202 = vadd.f32 %v507, %v1201
      %v1203 = vpop.f32.mrb[0].mxu0
      %1204 = vdwg.mxu0
      %1205 = vmatprep.subr.bf16.mxu0 0
      %1206 = vmatpush1.bf16.msra.mxu0 %v1001
      %1207 = vmatprep.subr.bf16.mxu0 0
      %1208 = vmatpush1.bf16.msra.mxu0 %v1002
      %1209 = vmatprep.subr.bf16.mxu0 0
      %1210 = vmatpush1.bf16.msra.mxu0 %v1003
      %1211 = vmatprep.subr.bf16.mxu0 0
      %1212 = vmatpush1.bf16.msra.mxu0 %v1004
      %1213 = vmatprep.subr.bf16.mxu0 0
      %1214 = vmatpush1.bf16.msra.mxu0 %v1005
      %1215 = vmatprep.subr.bf16.mxu0 0
      %1216 = vmatpush1.bf16.msra.mxu0 %v1006
      %1217 = vmatprep.subr.bf16.mxu0 0
      %1218 = vmatpush1.bf16.msra.mxu0 %v1007
      %1219 = vmatprep.subr.bf16.mxu0 0
      %1220 = vmatpush1.bf16.msra.mxu0 %v1008
      %1221 = vmatprep.subr.bf16.mxu0 0
      %1222 = vmatpush1.bf16.msra.mxu0 %v1009
      %1223 = vmatprep.subr.bf16.mxu0 0
      %1224 = vmatpush1.bf16.msra.mxu0 %v1010
      %1225 = vmatprep.subr.bf16.mxu0 0
      %1226 = vmatpush1.bf16.msra.mxu0 %v1011
      %1227 = vmatprep.subr.bf16.mxu0 0
      %1228 = vmatpush1.bf16.msra.mxu0 %v1012
      %1229 = vmatprep.subr.bf16.mxu0 0
      %1230 = vmatpush1.bf16.msra.mxu0 %v1013
      %1231 = vmatprep.subr.bf16.mxu0 0
      %1232 = vmatpush1.bf16.msra.mxu0 %v1014
      %1233 = vmatprep.subr.bf16.mxu0 0
      %1234 = vmatpush1.bf16.msra.mxu0 %v1015
      %1235 = vmatprep.subr.bf16.mxu0 0
      %1236 = vmatpush1.bf16.msra.mxu0 %v1016
      %1237 = vmatprep.mubr.bf16.mxu0 %v688
      %1238 = vmatmul.mubr.bf16.gmra.mrb[0].mxu0 %v687
      %v1239 = vpop.f32.mrb[0].mxu0
      %v1240 = vadd.f32 %v1143, %v1239
      %v1241 = vpop.f32.mrb[0].mxu0
      %v1242 = vpop.f32.mrb[0].mxu0
      %v1243 = vadd.f32 %v1146, %v1242
      %v1244 = vpop.f32.mrb[0].mxu0
      %1245 = vmatprep.mubr.bf16.mxu0 %v695
      %1246 = vmatmul.mubr.bf16.gmra.mrb[0].mxu0 %v694
      %v1247 = vpop.f32.mrb[0].mxu0
      %v1248 = vadd.f32 %v1151, %v1247
      %v1249 = vpop.f32.mrb[0].mxu0
      %v1250 = vpop.f32.mrb[0].mxu0
      %v1251 = vadd.f32 %v1154, %v1250
      %v1252 = vpop.f32.mrb[0].mxu0
      %1253 = vmatprep.mubr.bf16.mxu0 %v702
      %1254 = vmatmul.mubr.bf16.gmra.mrb[0].mxu0 %v701
      %v1255 = vpop.f32.mrb[0].mxu0
      %v1256 = vadd.f32 %v1159, %v1255
      %v1257 = vpop.f32.mrb[0].mxu0
      %v1258 = vpop.f32.mrb[0].mxu0
      %v1259 = vadd.f32 %v1162, %v1258
      %v1260 = vpop.f32.mrb[0].mxu0
      %1261 = vmatprep.mubr.bf16.mxu0 %v709
      %1262 = vmatmul.mubr.bf16.gmra.mrb[0].mxu0 %v708
      %v1263 = vpop.f32.mrb[0].mxu0
      %v1264 = vadd.f32 %v1167, %v1263
      %v1265 = vpop.f32.mrb[0].mxu0
      %v1266 = vpop.f32.mrb[0].mxu0
      %v1267 = vadd.f32 %v1170, %v1266
      %v1268 = vpop.f32.mrb[0].mxu0
      %1269 = vmatprep.mubr.bf16.mxu0 %v716
      %1270 = vmatmul.mubr.bf16.gmra.mrb[0].mxu0 %v715
      %v1271 = vpop.f32.mrb[0].mxu0
      %v1272 = vadd.f32 %v1175, %v1271
      %v1273 = vpop.f32.mrb[0].mxu0
      %v1274 = vpop.f32.mrb[0].mxu0
      %v1275 = vadd.f32 %v1178, %v1274
      %v1276 = vpop.f32.mrb[0].mxu0
      %1277 = vmatprep.mubr.bf16.mxu0 %v723
      %1278 = vmatmul.mubr.bf16.gmra.mrb[0].mxu0 %v722
      %v1279 = vpop.f32.mrb[0].mxu0
      %v1280 = vadd.f32 %v1183, %v1279
      %v1281 = vpop.f32.mrb[0].mxu0
      %v1282 = vpop.f32.mrb[0].mxu0
      %v1283 = vadd.f32 %v1186, %v1282
      %v1284 = vpop.f32.mrb[0].mxu0
      %1285 = vmatprep.mubr.bf16.mxu0 %v730
      %1286 = vmatmul.mubr.bf16.gmra.mrb[0].mxu0 %v729
      %v1287 = vpop.f32.mrb[0].mxu0
      %v1288 = vadd.f32 %v1191, %v1287
      %v1289 = vpop.f32.mrb[0].mxu0
      %v1290 = vpop.f32.mrb[0].mxu0
      %v1291 = vadd.f32 %v1194, %v1290
      %v1292 = vpop.f32.mrb[0].mxu0
      %1293 = vmatprep.mubr.bf16.mxu0 %v737
      %1294 = vmatmul.mubr.bf16.gmra.mrb[0].mxu0 %v736
      %v1295 = vpop.f32.mrb[0].mxu0
      %v1296 = vadd.f32 %v1199, %v1295
      %v1297 = vpop.f32.mrb[0].mxu0
      %v1298 = vpop.f32.mrb[0].mxu0
      %v1299 = vadd.f32 %v1202, %v1298
      %v1300 = vpop.f32.mrb[0].mxu0
      %1301 = vdwg.mxu0
      %1302 = vmatprep.subr.bf16.mxu0 0
      %1303 = vmatpush1.bf16.msra.mxu0 %v1017
      %1304 = vmatprep.subr.bf16.mxu0 0
      %1305 = vmatpush1.bf16.msra.mxu0 %v1018
      %1306 = vmatprep.subr.bf16.mxu0 0
      %1307 = vmatpush1.bf16.msra.mxu0 %v1019
      %1308 = vmatprep.subr.bf16.mxu0 0
      %1309 = vmatpush1.bf16.msra.mxu0 %v1020
      %1310 = vmatprep.subr.bf16.mxu0 0
      %1311 = vmatpush1.bf16.msra.mxu0 %v1021
      %1312 = vmatprep.subr.bf16.mxu0 0
      %1313 = vmatpush1.bf16.msra.mxu0 %v1022
      %1314 = vmatprep.subr.bf16.mxu0 0
      %1315 = vmatpush1.bf16.msra.mxu0 %v1023
      %1316 = vmatprep.subr.bf16.mxu0 0
      %1317 = vmatpush1.bf16.msra.mxu0 %v1024
      %1318 = vmatprep.subr.bf16.mxu0 0
      %1319 = vmatpush1.bf16.msra.mxu0 %v1025
      %1320 = vmatprep.subr.bf16.mxu0 0
      %1321 = vmatpush1.bf16.msra.mxu0 %v1026
      %1322 = vmatprep.subr.bf16.mxu0 0
      %1323 = vmatpush1.bf16.msra.mxu0 %v1027
      %1324 = vmatprep.subr.bf16.mxu0 0
      %1325 = vmatpush1.bf16.msra.mxu0 %v1028
      %1326 = vmatprep.subr.bf16.mxu0 0
      %1327 = vmatpush1.bf16.msra.mxu0 %v1029
      %1328 = vmatprep.subr.bf16.mxu0 0
      %1329 = vmatpush1.bf16.msra.mxu0 %v1030
      %1330 = vmatprep.subr.bf16.mxu0 0
      %1331 = vmatpush1.bf16.msra.mxu0 %v1031
      %1332 = vmatprep.subr.bf16.mxu0 0
      %1333 = vmatpush1.bf16.msra.mxu0 %v1032
      %1334 = vmatprep.mubr.bf16.mxu0 %v690
      %1335 = vmatmul.mubr.bf16.gmra.mrb[0].mxu0 %v689
      %v1336 = vpop.f32.mrb[0].mxu0
      %v1337 = vadd.f32 %v1240, %v1336
      %v1338 = vpop.f32.mrb[0].mxu0
      %v1339 = vpop.f32.mrb[0].mxu0
      %v1340 = vadd.f32 %v1243, %v1339
      %v1341 = vpop.f32.mrb[0].mxu0
      %1342 = vmatprep.mubr.bf16.mxu0 %v697
      %1343 = vmatmul.mubr.bf16.gmra.mrb[0].mxu0 %v696
      %v1344 = vpop.f32.mrb[0].mxu0
      %v1345 = vadd.f32 %v1248, %v1344
      %v1346 = vpop.f32.mrb[0].mxu0
      %v1347 = vpop.f32.mrb[0].mxu0
      %v1348 = vadd.f32 %v1251, %v1347
      %v1349 = vpop.f32.mrb[0].mxu0
      %1350 = vmatprep.mubr.bf16.mxu0 %v704
      %1351 = vmatmul.mubr.bf16.gmra.mrb[0].mxu0 %v703
      %v1352 = vpop.f32.mrb[0].mxu0
      %v1353 = vadd.f32 %v1256, %v1352
      %v1354 = vpop.f32.mrb[0].mxu0
      %v1355 = vpop.f32.mrb[0].mxu0
      %v1356 = vadd.f32 %v1259, %v1355
      %v1357 = vpop.f32.mrb[0].mxu0
      %1358 = vmatprep.mubr.bf16.mxu0 %v711
      %1359 = vmatmul.mubr.bf16.gmra.mrb[0].mxu0 %v710
      %v1360 = vpop.f32.mrb[0].mxu0
      %v1361 = vadd.f32 %v1264, %v1360
      %v1362 = vpop.f32.mrb[0].mxu0
      %v1363 = vpop.f32.mrb[0].mxu0
      %v1364 = vadd.f32 %v1267, %v1363
      %v1365 = vpop.f32.mrb[0].mxu0
      %1366 = vmatprep.mubr.bf16.mxu0 %v718
      %1367 = vmatmul.mubr.bf16.gmra.mrb[0].mxu0 %v717
      %v1368 = vpop.f32.mrb[0].mxu0
      %v1369 = vadd.f32 %v1272, %v1368
      %v1370 = vpop.f32.mrb[0].mxu0
      %v1371 = vpop.f32.mrb[0].mxu0
      %v1372 = vadd.f32 %v1275, %v1371
      %v1373 = vpop.f32.mrb[0].mxu0
      %1374 = vmatprep.mubr.bf16.mxu0 %v725
      %1375 = vmatmul.mubr.bf16.gmra.mrb[0].mxu0 %v724
      %v1376 = vpop.f32.mrb[0].mxu0
      %v1377 = vadd.f32 %v1280, %v1376
      %v1378 = vpop.f32.mrb[0].mxu0
      %v1379 = vpop.f32.mrb[0].mxu0
      %v1380 = vadd.f32 %v1283, %v1379
      %v1381 = vpop.f32.mrb[0].mxu0
      %1382 = vmatprep.mubr.bf16.mxu0 %v732
      %1383 = vmatmul.mubr.bf16.gmra.mrb[0].mxu0 %v731
      %v1384 = vpop.f32.mrb[0].mxu0
      %v1385 = vadd.f32 %v1288, %v1384
      %v1386 = vpop.f32.mrb[0].mxu0
      %v1387 = vpop.f32.mrb[0].mxu0
      %v1388 = vadd.f32 %v1291, %v1387
      %v1389 = vpop.f32.mrb[0].mxu0
      %1390 = vmatprep.mubr.bf16.mxu0 %v739
      %1391 = vmatmul.mubr.bf16.gmra.mrb[0].mxu0 %v738
      %v1392 = vpop.f32.mrb[0].mxu0
      %v1393 = vadd.f32 %v1296, %v1392
      %v1394 = vpop.f32.mrb[0].mxu0
      %v1395 = vpop.f32.mrb[0].mxu0
      %v1396 = vadd.f32 %v1299, %v1395
      %v1397 = vpop.f32.mrb[0].mxu0
      %1398 = vdwg.mxu0
      %1399 = vmatprep.subr.bf16.mxu0 0
      %1400 = vmatpush1.bf16.msra.mxu0 %v1033
      %1401 = vmatprep.subr.bf16.mxu0 0
      %1402 = vmatpush1.bf16.msra.mxu0 0
      %1403 = vmatprep.subr.bf16.mxu0 0
      %1404 = vmatpush1.bf16.msra.mxu0 0
      %1405 = vmatprep.subr.bf16.mxu0 0
      %1406 = vmatpush1.bf16.msra.mxu0 0
      %1407 = vmatprep.subr.bf16.mxu0 0
      %1408 = vmatpush1.bf16.msra.mxu0 0
      %1409 = vmatprep.subr.bf16.mxu0 0
      %1410 = vmatpush1.bf16.msra.mxu0 0
      %1411 = vmatprep.subr.bf16.mxu0 0
      %1412 = vmatpush1.bf16.msra.mxu0 0
      %1413 = vmatprep.subr.bf16.mxu0 0
      %1414 = vmatpush1.bf16.msra.mxu0 0
      %1415 = vmatprep.subr.bf16.mxu0 0
      %1416 = vmatpush1.bf16.msra.mxu0 0
      %1417 = vmatprep.subr.bf16.mxu0 0
      %1418 = vmatpush1.bf16.msra.mxu0 0
      %1419 = vmatprep.subr.bf16.mxu0 0
      %1420 = vmatpush1.bf16.msra.mxu0 0
      %1421 = vmatprep.subr.bf16.mxu0 0
      %1422 = vmatpush1.bf16.msra.mxu0 0
      %1423 = vmatprep.subr.bf16.mxu0 0
      %1424 = vmatpush1.bf16.msra.mxu0 0
      %1425 = vmatprep.subr.bf16.mxu0 0
      %1426 = vmatpush1.bf16.msra.mxu0 0
      %1427 = vmatprep.subr.bf16.mxu0 0
      %1428 = vmatpush1.bf16.msra.mxu0 0
      %1429 = vmatprep.subr.bf16.mxu0 0
      %1430 = vmatpush1.bf16.msra.mxu0 0
      %1431 = vmatprep.mubr.bf16.mxu0 0
      %1432 = vmatmul.mubr.bf16.gmra.mrb[0].mxu0 %v1085
      %v1433 = vpop.f32.mrb[0].mxu0
      %v1434 = vadd.f32 %v1337, %v1433
      %v1435 = vpop.f32.mrb[0].mxu0
      %v1436 = vpop.f32.mrb[0].mxu0
      %v1437 = vadd.f32 %v1340, %v1436
      %v1438 = vpop.f32.mrb[0].mxu0
      %1439 = vmatprep.mubr.bf16.mxu0 0
      %1440 = vmatmul.mubr.bf16.gmra.mrb[0].mxu0 %v1088
      %v1441 = vpop.f32.mrb[0].mxu0
      %v1442 = vadd.f32 %v1345, %v1441
      %v1443 = vpop.f32.mrb[0].mxu0
      %v1444 = vpop.f32.mrb[0].mxu0
      %v1445 = vadd.f32 %v1348, %v1444
      %v1446 = vpop.f32.mrb[0].mxu0
      %1447 = vmatprep.mubr.bf16.mxu0 0
      %1448 = vmatmul.mubr.bf16.gmra.mrb[0].mxu0 %v1091
      %v1449 = vpop.f32.mrb[0].mxu0
      %v1450 = vadd.f32 %v1353, %v1449
      %v1451 = vpop.f32.mrb[0].mxu0
      %v1452 = vpop.f32.mrb[0].mxu0
      %v1453 = vadd.f32 %v1356, %v1452
      %v1454 = vpop.f32.mrb[0].mxu0
      %1455 = vmatprep.mubr.bf16.mxu0 0
      %1456 = vmatmul.mubr.bf16.gmra.mrb[0].mxu0 %v1094
      %v1457 = vpop.f32.mrb[0].mxu0
      %v1458 = vadd.f32 %v1361, %v1457
      %v1459 = vpop.f32.mrb[0].mxu0
      %v1460 = vpop.f32.mrb[0].mxu0
      %v1461 = vadd.f32 %v1364, %v1460
      %v1462 = vpop.f32.mrb[0].mxu0
      %1463 = vmatprep.mubr.bf16.mxu0 0
      %1464 = vmatmul.mubr.bf16.gmra.mrb[0].mxu0 %v1097
      %v1465 = vpop.f32.mrb[0].mxu0
      %v1466 = vadd.f32 %v1369, %v1465
      %v1467 = vpop.f32.mrb[0].mxu0
      %v1468 = vpop.f32.mrb[0].mxu0
      %v1469 = vadd.f32 %v1372, %v1468
      %v1470 = vpop.f32.mrb[0].mxu0
      %1471 = vmatprep.mubr.bf16.mxu0 0
      %1472 = vmatmul.mubr.bf16.gmra.mrb[0].mxu0 %v1100
      %v1473 = vpop.f32.mrb[0].mxu0
      %v1474 = vadd.f32 %v1377, %v1473
      %v1475 = vpop.f32.mrb[0].mxu0
      %v1476 = vpop.f32.mrb[0].mxu0
      %v1477 = vadd.f32 %v1380, %v1476
      %v1478 = vpop.f32.mrb[0].mxu0
      %1479 = vmatprep.mubr.bf16.mxu0 0
      %1480 = vmatmul.mubr.bf16.gmra.mrb[0].mxu0 %v1103
      %v1481 = vpop.f32.mrb[0].mxu0
      %v1482 = vadd.f32 %v1385, %v1481
      %v1483 = vpop.f32.mrb[0].mxu0
      %v1484 = vpop.f32.mrb[0].mxu0
      %v1485 = vadd.f32 %v1388, %v1484
      %v1486 = vpop.f32.mrb[0].mxu0
      %1487 = vmatprep.mubr.bf16.mxu0 0
      %1488 = vmatmul.mubr.bf16.gmra.mrb[0].mxu0 %v1106
      %v1489 = vpop.f32.mrb[0].mxu0
      %v1490 = vadd.f32 %v1393, %v1489
      %v1491 = vpop.f32.mrb[0].mxu0
      %v1492 = vpop.f32.mrb[0].mxu0
      %v1493 = vadd.f32 %v1396, %v1492
      %v1494 = vpop.f32.mrb[0].mxu0
      %1495 = vdwg.mxu0
      %v1496 = vmax.f32 %v1434, 0.0
      %v1497 = vmax.f32 %v1437, 0.0
      %v1498 = vmax.f32 %v1442, 0.0
      %v1499 = vmax.f32 %v1445, 0.0
      %v1500 = vmax.f32 %v1450, 0.0
      %v1501 = vmax.f32 %v1453, 0.0
      %v1502 = vmax.f32 %v1458, 0.0
      %v1503 = vmax.f32 %v1461, 0.0
      %v1504 = vmax.f32 %v1466, 0.0
      %v1505 = vmax.f32 %v1469, 0.0
      %v1506 = vmax.f32 %v1474, 0.0
      %v1507 = vmax.f32 %v1477, 0.0
      %v1508 = vmax.f32 %v1482, 0.0
      %v1509 = vmax.f32 %v1485, 0.0
      %v1510 = vmax.f32 %v1490, 0.0
      %v1511 = vmax.f32 %v1493, 0.0
      %v1512 = vpack.c.bf16 %v1497, %v1496
      %v1513 = vpack.c.bf16 %v1499, %v1498
      %v1514 = vpack.c.bf16 %v1501, %v1500
      %v1515 = vpack.c.bf16 %v1503, %v1502
      %v1516 = vpack.c.bf16 %v1505, %v1504
      %v1517 = vpack.c.bf16 %v1507, %v1506
      %v1518 = vpack.c.bf16 %v1509, %v1508
      %v1519 = vpack.c.bf16 %v1511, %v1510
      %v1520 = vld [vmem:[%s3] sm:$0xf]
      %v1521 = vld [vmem:[%s3 + $0x4] sm:$0xf]
      %v1522 = vld [vmem:[%s3 + $0x8] sm:$0xf]
      %v1523 = vld [vmem:[%s3 + $0xc] sm:$0xf]
      %v1524 = vld [vmem:[%s3 + $0x10] sm:$0xf]
      %v1525 = vld [vmem:[%s3 + $0x14] sm:$0xf]
      %v1526 = vld [vmem:[%s3 + $0x18] sm:$0xf]
      %v1527 = vld [vmem:[%s3 + $0x1c] sm:$0xf]
      %v1528 = vld [vmem:[%s4] sm:$0x1]
      %v1530 = vlaneseq
      %v1531 = vshrl.u32 %v1530, 7
      %v1532 = vsub.s32 0, %v1531
      %v1533 = vrot.slane %v1528, %v1532
      %v1543 = vunpack.c.l.b16 %v1520
      %v1544 = vunpack.c.l.b16 %v1521
      %v1545 = vunpack.c.l.b16 %v1522
      %v1546 = vunpack.c.l.b16 %v1523
      %v1547 = vunpack.c.l.b16 %v1524
      %v1548 = vunpack.c.l.b16 %v1525
      %v1549 = vunpack.c.l.b16 %v1526
      %v1550 = vunpack.c.l.b16 %v1527
      %v1551 = vpack.c.b16 %v1544, %v1543
      %v1552 = vpack.c.b16 %v1546, %v1545
      %v1553 = vpack.c.b16 %v1548, %v1547
      %v1554 = vpack.c.b16 %v1550, %v1549
      %vm1559 = vcmask 523264
      %v1561 = vsel %vm1559, %v1512, 0
      %v1564 = vsel %vm1559, %v1513, 0
      %v1567 = vsel %vm1559, %v1514, 0
      %v1570 = vsel %vm1559, %v1515, 0
      %v1573 = vsel %vm1559, %v1516, 0
      %v1576 = vsel %vm1559, %v1517, 0
      %v1579 = vsel %vm1559, %v1518, 0
      %v1582 = vsel %vm1559, %v1519, 0
      %1584 = vmatprep.subr.bf16.mxu0 0
      %1585 = vmatpush1.bf16.msra.mxu0 %v1551
      %1586 = vmatprep.subr.bf16.mxu0 0
      %1587 = vmatpush1.bf16.msra.mxu0 %v1552
      %1588 = vmatprep.subr.bf16.mxu0 0
      %1589 = vmatpush1.bf16.msra.mxu0 %v1553
      %1590 = vmatprep.subr.bf16.mxu0 0
      %1591 = vmatpush1.bf16.msra.mxu0 %v1554
      %1592 = vmatprep.subr.bf16.mxu0 0
      %1593 = vmatpush1.bf16.msra.mxu0 0
      %1594 = vmatprep.subr.bf16.mxu0 0
      %1595 = vmatpush1.bf16.msra.mxu0 0
      %1596 = vmatprep.subr.bf16.mxu0 0
      %1597 = vmatpush1.bf16.msra.mxu0 0
      %1598 = vmatprep.subr.bf16.mxu0 0
      %1599 = vmatpush1.bf16.msra.mxu0 0
      %1600 = vmatprep.subr.bf16.mxu0 0
      %1601 = vmatpush1.bf16.msra.mxu0 0
      %1602 = vmatprep.subr.bf16.mxu0 0
      %1603 = vmatpush1.bf16.msra.mxu0 0
      %1604 = vmatprep.subr.bf16.mxu0 0
      %1605 = vmatpush1.bf16.msra.mxu0 0
      %1606 = vmatprep.subr.bf16.mxu0 0
      %1607 = vmatpush1.bf16.msra.mxu0 0
      %1608 = vmatprep.subr.bf16.mxu0 0
      %1609 = vmatpush1.bf16.msra.mxu0 0
      %1610 = vmatprep.subr.bf16.mxu0 0
      %1611 = vmatpush1.bf16.msra.mxu0 0
      %1612 = vmatprep.subr.bf16.mxu0 0
      %1613 = vmatpush1.bf16.msra.mxu0 0
      %1614 = vmatprep.subr.bf16.mxu0 0
      %1615 = vmatpush1.bf16.msra.mxu0 0
      %1616 = vmatprep.mubr.bf16.mxu0 0
      %1617 = vmatmul.mubr.bf16.gmra.mrb[0].mxu0 %v1561
      %v1618 = vpop.f32.mrb[0].mxu0
      %v1619 = vadd.f32 %v1533, %v1618
      %v1620 = vpop.f32.mrb[0].mxu0
      %v1621 = vpop.f32.mrb[0].mxu0
      %v1622 = vadd.f32 %v1533, %v1621
      %v1623 = vpop.f32.mrb[0].mxu0
      %1624 = vmatprep.mubr.bf16.mxu0 0
      %1625 = vmatmul.mubr.bf16.gmra.mrb[0].mxu0 %v1564
      %v1626 = vpop.f32.mrb[0].mxu0
      %v1627 = vadd.f32 %v1533, %v1626
      %v1628 = vpop.f32.mrb[0].mxu0
      %v1629 = vpop.f32.mrb[0].mxu0
      %v1630 = vadd.f32 %v1533, %v1629
      %v1631 = vpop.f32.mrb[0].mxu0
      %1632 = vmatprep.mubr.bf16.mxu0 0
      %1633 = vmatmul.mubr.bf16.gmra.mrb[0].mxu0 %v1567
      %v1634 = vpop.f32.mrb[0].mxu0
      %v1635 = vadd.f32 %v1533, %v1634
      %v1636 = vpop.f32.mrb[0].mxu0
      %v1637 = vpop.f32.mrb[0].mxu0
      %v1638 = vadd.f32 %v1533, %v1637
      %v1639 = vpop.f32.mrb[0].mxu0
      %1640 = vmatprep.mubr.bf16.mxu0 0
      %1641 = vmatmul.mubr.bf16.gmra.mrb[0].mxu0 %v1570
      %v1642 = vpop.f32.mrb[0].mxu0
      %v1643 = vadd.f32 %v1533, %v1642
      %v1644 = vpop.f32.mrb[0].mxu0
      %v1645 = vpop.f32.mrb[0].mxu0
      %v1646 = vadd.f32 %v1533, %v1645
      %v1647 = vpop.f32.mrb[0].mxu0
      %1648 = vmatprep.mubr.bf16.mxu0 0
      %1649 = vmatmul.mubr.bf16.gmra.mrb[0].mxu0 %v1573
      %v1650 = vpop.f32.mrb[0].mxu0
      %v1651 = vadd.f32 %v1533, %v1650
      %v1652 = vpop.f32.mrb[0].mxu0
      %v1653 = vpop.f32.mrb[0].mxu0
      %v1654 = vadd.f32 %v1533, %v1653
      %v1655 = vpop.f32.mrb[0].mxu0
      %1656 = vmatprep.mubr.bf16.mxu0 0
      %1657 = vmatmul.mubr.bf16.gmra.mrb[0].mxu0 %v1576
      %v1658 = vpop.f32.mrb[0].mxu0
      %v1659 = vadd.f32 %v1533, %v1658
      %v1660 = vpop.f32.mrb[0].mxu0
      %v1661 = vpop.f32.mrb[0].mxu0
      %v1662 = vadd.f32 %v1533, %v1661
      %v1663 = vpop.f32.mrb[0].mxu0
      %1664 = vmatprep.mubr.bf16.mxu0 0
      %1665 = vmatmul.mubr.bf16.gmra.mrb[0].mxu0 %v1579
      %v1666 = vpop.f32.mrb[0].mxu0
      %v1667 = vadd.f32 %v1533, %v1666
      %v1668 = vpop.f32.mrb[0].mxu0
      %v1669 = vpop.f32.mrb[0].mxu0
      %v1670 = vadd.f32 %v1533, %v1669
      %v1671 = vpop.f32.mrb[0].mxu0
      %1672 = vmatprep.mubr.bf16.mxu0 0
      %1673 = vmatmul.mubr.bf16.gmra.mrb[0].mxu0 %v1582
      %v1674 = vpop.f32.mrb[0].mxu0
      %v1675 = vadd.f32 %v1533, %v1674
      %v1676 = vpop.f32.mrb[0].mxu0
      %v1677 = vpop.f32.mrb[0].mxu0
      %v1678 = vadd.f32 %v1533, %v1677
      %v1679 = vpop.f32.mrb[0].mxu0
      %1680 = vdwg.mxu0
      %v1681 = vmax.f32 %v1619, 0.0
      %v1682 = vmax.f32 %v1622, 0.0
      %v1683 = vmax.f32 %v1627, 0.0
      %v1684 = vmax.f32 %v1630, 0.0
      %v1685 = vmax.f32 %v1635, 0.0
      %v1686 = vmax.f32 %v1638, 0.0
      %v1687 = vmax.f32 %v1643, 0.0
      %v1688 = vmax.f32 %v1646, 0.0
      %v1689 = vmax.f32 %v1651, 0.0
      %v1690 = vmax.f32 %v1654, 0.0
      %v1691 = vmax.f32 %v1659, 0.0
      %v1692 = vmax.f32 %v1662, 0.0
      %v1693 = vmax.f32 %v1667, 0.0
      %v1694 = vmax.f32 %v1670, 0.0
      %v1695 = vmax.f32 %v1675, 0.0
      %v1696 = vmax.f32 %v1678, 0.0
      %v1697 = vpack.c.bf16 %v1682, %v1681
      %v1698 = vpack.c.bf16 %v1684, %v1683
      %v1699 = vpack.c.bf16 %v1686, %v1685
      %v1700 = vpack.c.bf16 %v1688, %v1687
      %v1701 = vpack.c.bf16 %v1690, %v1689
      %v1702 = vpack.c.bf16 %v1692, %v1691
      %v1703 = vpack.c.bf16 %v1694, %v1693
      %v1704 = vpack.c.bf16 %v1696, %v1695
      %v1705 = vld [vmem:[%s5] sm:$0xf]
      %v1706 = vld [vmem:[%s5 + $0x4] sm:$0xf]
      %v1707 = vld [vmem:[%s5 + $0x8] sm:$0xf]
      %v1708 = vld [vmem:[%s5 + $0xc] sm:$0xf]
      %v1709 = vld [vmem:[%s5 + $0x10] sm:$0xf]
      %v1710 = vld [vmem:[%s5 + $0x14] sm:$0xf]
      %v1711 = vld [vmem:[%s5 + $0x18] sm:$0xf]
      %v1712 = vld [vmem:[%s5 + $0x1c] sm:$0xf]
      %v1713 = vld [vmem:[%s6] sm:$0x1]
      %v1715 = vlaneseq
      %v1716 = vshrl.u32 %v1715, 7
      %v1717 = vsub.s32 0, %v1716
      %v1718 = vrot.slane %v1713, %v1717
      %v1728 = vunpack.c.l.b16 %v1705
      %v1729 = vunpack.c.l.b16 %v1706
      %v1730 = vunpack.c.l.b16 %v1707
      %v1731 = vunpack.c.l.b16 %v1708
      %v1732 = vunpack.c.l.b16 %v1709
      %v1733 = vunpack.c.l.b16 %v1710
      %v1734 = vunpack.c.l.b16 %v1711
      %v1735 = vunpack.c.l.b16 %v1712
      %v1736 = vpack.c.b16 %v1729, %v1728
      %v1737 = vpack.c.b16 %v1731, %v1730
      %v1738 = vpack.c.b16 %v1733, %v1732
      %v1739 = vpack.c.b16 %v1735, %v1734
      %v1745 = vsel %vm1559, %v1697, 0
      %v1748 = vsel %vm1559, %v1698, 0
      %v1751 = vsel %vm1559, %v1699, 0
      %v1754 = vsel %vm1559, %v1700, 0
      %v1757 = vsel %vm1559, %v1701, 0
      %v1760 = vsel %vm1559, %v1702, 0
      %v1763 = vsel %vm1559, %v1703, 0
      %v1766 = vsel %vm1559, %v1704, 0
      %1768 = vmatprep.subr.bf16.mxu0 0
      %1769 = vmatpush1.bf16.msra.mxu0 %v1736
      %1770 = vmatprep.subr.bf16.mxu0 0
      %1771 = vmatpush1.bf16.msra.mxu0 %v1737
      %1772 = vmatprep.subr.bf16.mxu0 0
      %1773 = vmatpush1.bf16.msra.mxu0 %v1738
      %1774 = vmatprep.subr.bf16.mxu0 0
      %1775 = vmatpush1.bf16.msra.mxu0 %v1739
      %1776 = vmatprep.subr.bf16.mxu0 0
      %1777 = vmatpush1.bf16.msra.mxu0 0
      %1778 = vmatprep.subr.bf16.mxu0 0
      %1779 = vmatpush1.bf16.msra.mxu0 0
      %1780 = vmatprep.subr.bf16.mxu0 0
      %1781 = vmatpush1.bf16.msra.mxu0 0
      %1782 = vmatprep.subr.bf16.mxu0 0
      %1783 = vmatpush1.bf16.msra.mxu0 0
      %1784 = vmatprep.subr.bf16.mxu0 0
      %1785 = vmatpush1.bf16.msra.mxu0 0
      %1786 = vmatprep.subr.bf16.mxu0 0
      %1787 = vmatpush1.bf16.msra.mxu0 0
      %1788 = vmatprep.subr.bf16.mxu0 0
      %1789 = vmatpush1.bf16.msra.mxu0 0
      %1790 = vmatprep.subr.bf16.mxu0 0
      %1791 = vmatpush1.bf16.msra.mxu0 0
      %1792 = vmatprep.subr.bf16.mxu0 0
      %1793 = vmatpush1.bf16.msra.mxu0 0
      %1794 = vmatprep.subr.bf16.mxu0 0
      %1795 = vmatpush1.bf16.msra.mxu0 0
      %1796 = vmatprep.subr.bf16.mxu0 0
      %1797 = vmatpush1.bf16.msra.mxu0 0
      %1798 = vmatprep.subr.bf16.mxu0 0
      %1799 = vmatpush1.bf16.msra.mxu0 0
      %1800 = vmatprep.mubr.bf16.mxu0 0
      %1801 = vmatmul.mubr.bf16.gmra.mrb[0].mxu0 %v1745
      %v1802 = vpop.f32.mrb[0].mxu0
      %v1803 = vadd.f32 %v1718, %v1802
      %v1804 = vpop.f32.mrb[0].mxu0
      %v1805 = vpop.f32.mrb[0].mxu0
      %v1806 = vadd.f32 %v1718, %v1805
      %v1807 = vpop.f32.mrb[0].mxu0
      %1808 = vmatprep.mubr.bf16.mxu0 0
      %1809 = vmatmul.mubr.bf16.gmra.mrb[0].mxu0 %v1748
      %v1810 = vpop.f32.mrb[0].mxu0
      %v1811 = vadd.f32 %v1718, %v1810
      %v1812 = vpop.f32.mrb[0].mxu0
      %v1813 = vpop.f32.mrb[0].mxu0
      %v1814 = vadd.f32 %v1718, %v1813
      %v1815 = vpop.f32.mrb[0].mxu0
      %1816 = vmatprep.mubr.bf16.mxu0 0
      %1817 = vmatmul.mubr.bf16.gmra.mrb[0].mxu0 %v1751
      %v1818 = vpop.f32.mrb[0].mxu0
      %v1819 = vadd.f32 %v1718, %v1818
      %v1820 = vpop.f32.mrb[0].mxu0
      %v1821 = vpop.f32.mrb[0].mxu0
      %v1822 = vadd.f32 %v1718, %v1821
      %v1823 = vpop.f32.mrb[0].mxu0
      %1824 = vmatprep.mubr.bf16.mxu0 0
      %1825 = vmatmul.mubr.bf16.gmra.mrb[0].mxu0 %v1754
      %v1826 = vpop.f32.mrb[0].mxu0
      %v1827 = vadd.f32 %v1718, %v1826
      %v1828 = vpop.f32.mrb[0].mxu0
      %v1829 = vpop.f32.mrb[0].mxu0
      %v1830 = vadd.f32 %v1718, %v1829
      %v1831 = vpop.f32.mrb[0].mxu0
      %1832 = vmatprep.mubr.bf16.mxu0 0
      %1833 = vmatmul.mubr.bf16.gmra.mrb[0].mxu0 %v1757
      %v1834 = vpop.f32.mrb[0].mxu0
      %v1835 = vadd.f32 %v1718, %v1834
      %v1836 = vpop.f32.mrb[0].mxu0
      %v1837 = vpop.f32.mrb[0].mxu0
      %v1838 = vadd.f32 %v1718, %v1837
      %v1839 = vpop.f32.mrb[0].mxu0
      %1840 = vmatprep.mubr.bf16.mxu0 0
      %1841 = vmatmul.mubr.bf16.gmra.mrb[0].mxu0 %v1760
      %v1842 = vpop.f32.mrb[0].mxu0
      %v1843 = vadd.f32 %v1718, %v1842
      %v1844 = vpop.f32.mrb[0].mxu0
      %v1845 = vpop.f32.mrb[0].mxu0
      %v1846 = vadd.f32 %v1718, %v1845
      %v1847 = vpop.f32.mrb[0].mxu0
      %1848 = vmatprep.mubr.bf16.mxu0 0
      %1849 = vmatmul.mubr.bf16.gmra.mrb[0].mxu0 %v1763
      %v1850 = vpop.f32.mrb[0].mxu0
      %v1851 = vadd.f32 %v1718, %v1850
      %v1852 = vpop.f32.mrb[0].mxu0
      %v1853 = vpop.f32.mrb[0].mxu0
      %v1854 = vadd.f32 %v1718, %v1853
      %v1855 = vpop.f32.mrb[0].mxu0
      %1856 = vmatprep.mubr.bf16.mxu0 0
      %1857 = vmatmul.mubr.bf16.gmra.mrb[0].mxu0 %v1766
      %v1858 = vpop.f32.mrb[0].mxu0
      %v1859 = vadd.f32 %v1718, %v1858
      %v1860 = vpop.f32.mrb[0].mxu0
      %v1861 = vpop.f32.mrb[0].mxu0
      %v1862 = vadd.f32 %v1718, %v1861
      %v1863 = vpop.f32.mrb[0].mxu0
      %1864 = vdwg.mxu0
      %v1865 = vmax.f32 %v1803, 0.0
      %v1866 = vmax.f32 %v1806, 0.0
      %v1867 = vmax.f32 %v1811, 0.0
      %v1868 = vmax.f32 %v1814, 0.0
      %v1869 = vmax.f32 %v1819, 0.0
      %v1870 = vmax.f32 %v1822, 0.0
      %v1871 = vmax.f32 %v1827, 0.0
      %v1872 = vmax.f32 %v1830, 0.0
      %v1873 = vmax.f32 %v1835, 0.0
      %v1874 = vmax.f32 %v1838, 0.0
      %v1875 = vmax.f32 %v1843, 0.0
      %v1876 = vmax.f32 %v1846, 0.0
      %v1877 = vmax.f32 %v1851, 0.0
      %v1878 = vmax.f32 %v1854, 0.0
      %v1879 = vmax.f32 %v1859, 0.0
      %v1880 = vmax.f32 %v1862, 0.0
      %v1881 = vpack.c.bf16 %v1866, %v1865
      %v1882 = vpack.c.bf16 %v1868, %v1867
      %v1883 = vpack.c.bf16 %v1870, %v1869
      %v1884 = vpack.c.bf16 %v1872, %v1871
      %v1885 = vpack.c.bf16 %v1874, %v1873
      %v1886 = vpack.c.bf16 %v1876, %v1875
      %v1887 = vpack.c.bf16 %v1878, %v1877
      %v1888 = vpack.c.bf16 %v1880, %v1879
      %v1889 = vld [vmem:[%s7] sm:$0xf]
      %v1890 = vld [vmem:[%s7 + $0x4] sm:$0xf]
      %v1891 = vld [vmem:[%s7 + $0x8] sm:$0xf]
      %v1892 = vld [vmem:[%s7 + $0xc] sm:$0xf]
      %v1893 = vld [vmem:[%s7 + $0x10] sm:$0xf]
      %v1894 = vld [vmem:[%s7 + $0x14] sm:$0xf]
      %v1895 = vld [vmem:[%s7 + $0x18] sm:$0xf]
      %v1896 = vld [vmem:[%s7 + $0x1c] sm:$0xf]
      %v1897 = vld [vmem:[%s8] sm:$0x1]
      %v1899 = vlaneseq
      %v1900 = vshrl.u32 %v1899, 7
      %v1901 = vsub.s32 0, %v1900
      %v1902 = vrot.slane %v1897, %v1901
      %v1912 = vunpack.c.l.b16 %v1889
      %v1913 = vunpack.c.l.b16 %v1890
      %v1914 = vunpack.c.l.b16 %v1891
      %v1915 = vunpack.c.l.b16 %v1892
      %v1916 = vunpack.c.l.b16 %v1893
      %v1917 = vunpack.c.l.b16 %v1894
      %v1918 = vunpack.c.l.b16 %v1895
      %v1919 = vunpack.c.l.b16 %v1896
      %v1920 = vpack.c.b16 %v1913, %v1912
      %v1921 = vpack.c.b16 %v1915, %v1914
      %v1922 = vpack.c.b16 %v1917, %v1916
      %v1923 = vpack.c.b16 %v1919, %v1918
      %v1929 = vsel %vm1559, %v1881, 0
      %v1932 = vsel %vm1559, %v1882, 0
      %v1935 = vsel %vm1559, %v1883, 0
      %v1938 = vsel %vm1559, %v1884, 0
      %v1941 = vsel %vm1559, %v1885, 0
      %v1944 = vsel %vm1559, %v1886, 0
      %v1947 = vsel %vm1559, %v1887, 0
      %v1950 = vsel %vm1559, %v1888, 0
      %1952 = vmatprep.subr.bf16.mxu0 0
      %1953 = vmatpush1.bf16.msra.mxu0 %v1920
      %1954 = vmatprep.subr.bf16.mxu0 0
      %1955 = vmatpush1.bf16.msra.mxu0 %v1921
      %1956 = vmatprep.subr.bf16.mxu0 0
      %1957 = vmatpush1.bf16.msra.mxu0 %v1922
      %1958 = vmatprep.subr.bf16.mxu0 0
      %1959 = vmatpush1.bf16.msra.mxu0 %v1923
      %1960 = vmatprep.subr.bf16.mxu0 0
      %1961 = vmatpush1.bf16.msra.mxu0 0
      %1962 = vmatprep.subr.bf16.mxu0 0
      %1963 = vmatpush1.bf16.msra.mxu0 0
      %1964 = vmatprep.subr.bf16.mxu0 0
      %1965 = vmatpush1.bf16.msra.mxu0 0
      %1966 = vmatprep.subr.bf16.mxu0 0
      %1967 = vmatpush1.bf16.msra.mxu0 0
      %1968 = vmatprep.subr.bf16.mxu0 0
      %1969 = vmatpush1.bf16.msra.mxu0 0
      %1970 = vmatprep.subr.bf16.mxu0 0
      %1971 = vmatpush1.bf16.msra.mxu0 0
      %1972 = vmatprep.subr.bf16.mxu0 0
      %1973 = vmatpush1.bf16.msra.mxu0 0
      %1974 = vmatprep.subr.bf16.mxu0 0
      %1975 = vmatpush1.bf16.msra.mxu0 0
      %1976 = vmatprep.subr.bf16.mxu0 0
      %1977 = vmatpush1.bf16.msra.mxu0 0
      %1978 = vmatprep.subr.bf16.mxu0 0
      %1979 = vmatpush1.bf16.msra.mxu0 0
      %1980 = vmatprep.subr.bf16.mxu0 0
      %1981 = vmatpush1.bf16.msra.mxu0 0
      %1982 = vmatprep.subr.bf16.mxu0 0
      %1983 = vmatpush1.bf16.msra.mxu0 0
      %1984 = vmatprep.mubr.bf16.mxu0 0
      %1985 = vmatmul.mubr.bf16.gmra.mrb[0].mxu0 %v1929
      %v1986 = vpop.f32.mrb[0].mxu0
      %v1987 = vadd.f32 %v1902, %v1986
      %v1988 = vpop.f32.mrb[0].mxu0
      %v1989 = vpop.f32.mrb[0].mxu0
      %v1990 = vadd.f32 %v1902, %v1989
      %v1991 = vpop.f32.mrb[0].mxu0
      %1992 = vmatprep.mubr.bf16.mxu0 0
      %1993 = vmatmul.mubr.bf16.gmra.mrb[0].mxu0 %v1932
      %v1994 = vpop.f32.mrb[0].mxu0
      %v1995 = vadd.f32 %v1902, %v1994
      %v1996 = vpop.f32.mrb[0].mxu0
      %v1997 = vpop.f32.mrb[0].mxu0
      %v1998 = vadd.f32 %v1902, %v1997
      %v1999 = vpop.f32.mrb[0].mxu0
      %2000 = vmatprep.mubr.bf16.mxu0 0
      %2001 = vmatmul.mubr.bf16.gmra.mrb[0].mxu0 %v1935
      %v2002 = vpop.f32.mrb[0].mxu0
      %v2003 = vadd.f32 %v1902, %v2002
      %v2004 = vpop.f32.mrb[0].mxu0
      %v2005 = vpop.f32.mrb[0].mxu0
      %v2006 = vadd.f32 %v1902, %v2005
      %v2007 = vpop.f32.mrb[0].mxu0
      %2008 = vmatprep.mubr.bf16.mxu0 0
      %2009 = vmatmul.mubr.bf16.gmra.mrb[0].mxu0 %v1938
      %v2010 = vpop.f32.mrb[0].mxu0
      %v2011 = vadd.f32 %v1902, %v2010
      %v2012 = vpop.f32.mrb[0].mxu0
      %v2013 = vpop.f32.mrb[0].mxu0
      %v2014 = vadd.f32 %v1902, %v2013
      %v2015 = vpop.f32.mrb[0].mxu0
      %2016 = vmatprep.mubr.bf16.mxu0 0
      %2017 = vmatmul.mubr.bf16.gmra.mrb[0].mxu0 %v1941
      %v2018 = vpop.f32.mrb[0].mxu0
      %v2019 = vadd.f32 %v1902, %v2018
      %v2020 = vpop.f32.mrb[0].mxu0
      %v2021 = vpop.f32.mrb[0].mxu0
      %v2022 = vadd.f32 %v1902, %v2021
      %v2023 = vpop.f32.mrb[0].mxu0
      %2024 = vmatprep.mubr.bf16.mxu0 0
      %2025 = vmatmul.mubr.bf16.gmra.mrb[0].mxu0 %v1944
      %v2026 = vpop.f32.mrb[0].mxu0
      %v2027 = vadd.f32 %v1902, %v2026
      %v2028 = vpop.f32.mrb[0].mxu0
      %v2029 = vpop.f32.mrb[0].mxu0
      %v2030 = vadd.f32 %v1902, %v2029
      %v2031 = vpop.f32.mrb[0].mxu0
      %2032 = vmatprep.mubr.bf16.mxu0 0
      %2033 = vmatmul.mubr.bf16.gmra.mrb[0].mxu0 %v1947
      %v2034 = vpop.f32.mrb[0].mxu0
      %v2035 = vadd.f32 %v1902, %v2034
      %v2036 = vpop.f32.mrb[0].mxu0
      %v2037 = vpop.f32.mrb[0].mxu0
      %v2038 = vadd.f32 %v1902, %v2037
      %v2039 = vpop.f32.mrb[0].mxu0
      %2040 = vmatprep.mubr.bf16.mxu0 0
      %2041 = vmatmul.mubr.bf16.gmra.mrb[0].mxu0 %v1950
      %v2042 = vpop.f32.mrb[0].mxu0
      %v2043 = vadd.f32 %v1902, %v2042
      %v2044 = vpop.f32.mrb[0].mxu0
      %v2045 = vpop.f32.mrb[0].mxu0
      %v2046 = vadd.f32 %v1902, %v2045
      %v2047 = vpop.f32.mrb[0].mxu0
      %2048 = vdwg.mxu0
      %2049 = vmax.xlane.f32.xlu0 %v1987
      %v2050 = vpop.xlane.xlu0 %2049
      %2051 = vmax.xlane.f32.xlu0 %v1990
      %v2052 = vpop.xlane.xlu0 %2051
      %2053 = vmax.xlane.f32.xlu0 %v1995
      %v2054 = vpop.xlane.xlu0 %2053
      %2055 = vmax.xlane.f32.xlu0 %v1998
      %v2056 = vpop.xlane.xlu0 %2055
      %2057 = vmax.xlane.f32.xlu0 %v2003
      %v2058 = vpop.xlane.xlu0 %2057
      %2059 = vmax.xlane.f32.xlu0 %v2006
      %v2060 = vpop.xlane.xlu0 %2059
      %2061 = vmax.xlane.f32.xlu0 %v2011
      %v2062 = vpop.xlane.xlu0 %2061
      %2063 = vmax.xlane.f32.xlu0 %v2014
      %v2064 = vpop.xlane.xlu0 %2063
      %2065 = vmax.xlane.f32.xlu0 %v2019
      %v2066 = vpop.xlane.xlu0 %2065
      %2067 = vmax.xlane.f32.xlu0 %v2022
      %v2068 = vpop.xlane.xlu0 %2067
      %2069 = vmax.xlane.f32.xlu0 %v2027
      %v2070 = vpop.xlane.xlu0 %2069
      %2071 = vmax.xlane.f32.xlu0 %v2030
      %v2072 = vpop.xlane.xlu0 %2071
      %2073 = vmax.xlane.f32.xlu0 %v2035
      %v2074 = vpop.xlane.xlu0 %2073
      %2075 = vmax.xlane.f32.xlu0 %v2038
      %v2076 = vpop.xlane.xlu0 %2075
      %2077 = vmax.xlane.f32.xlu0 %v2043
      %v2078 = vpop.xlane.xlu0 %2077
      %2079 = vmax.xlane.f32.xlu0 %v2046
      %v2080 = vpop.xlane.xlu0 %2079
      %v2081 = vsub.f32 %v1987, %v2050
      %v2082 = vsub.f32 %v1990, %v2052
      %v2083 = vsub.f32 %v1995, %v2054
      %v2084 = vsub.f32 %v1998, %v2056
      %v2085 = vsub.f32 %v2003, %v2058
      %v2086 = vsub.f32 %v2006, %v2060
      %v2087 = vsub.f32 %v2011, %v2062
      %v2088 = vsub.f32 %v2014, %v2064
      %v2089 = vsub.f32 %v2019, %v2066
      %v2090 = vsub.f32 %v2022, %v2068
      %v2091 = vsub.f32 %v2027, %v2070
      %v2092 = vsub.f32 %v2030, %v2072
      %v2093 = vsub.f32 %v2035, %v2074
      %v2094 = vsub.f32 %v2038, %v2076
      %v2095 = vsub.f32 %v2043, %v2078
      %v2096 = vsub.f32 %v2046, %v2080
      %v2097 = vmul.f32 %v2081, 1.442695
      %v2098 = vpow.pop %v2097
      %v2099 = vmul.f32 %v2082, 1.442695
      %v2100 = vpow.pop %v2099
      %v2101 = vmul.f32 %v2083, 1.442695
      %v2102 = vpow.pop %v2101
      %v2103 = vmul.f32 %v2084, 1.442695
      %v2104 = vpow.pop %v2103
      %v2105 = vmul.f32 %v2085, 1.442695
      %v2106 = vpow.pop %v2105
      %v2107 = vmul.f32 %v2086, 1.442695
      %v2108 = vpow.pop %v2107
      %v2109 = vmul.f32 %v2087, 1.442695
      %v2110 = vpow.pop %v2109
      %v2111 = vmul.f32 %v2088, 1.442695
      %v2112 = vpow.pop %v2111
      %v2113 = vmul.f32 %v2089, 1.442695
      %v2114 = vpow.pop %v2113
      %v2115 = vmul.f32 %v2090, 1.442695
      %v2116 = vpow.pop %v2115
      %v2117 = vmul.f32 %v2091, 1.442695
      %v2118 = vpow.pop %v2117
      %v2119 = vmul.f32 %v2092, 1.442695
      %v2120 = vpow.pop %v2119
      %v2121 = vmul.f32 %v2093, 1.442695
      %v2122 = vpow.pop %v2121
      %v2123 = vmul.f32 %v2094, 1.442695
      %v2124 = vpow.pop %v2123
      %v2125 = vmul.f32 %v2095, 1.442695
      %v2126 = vpow.pop %v2125
      %v2127 = vmul.f32 %v2096, 1.442695
      %v2128 = vpow.pop %v2127
      %2129 = vadd.xlane.f32.xlu0 %v2098
      %v2130 = vpop.xlane.xlu0 %2129
      %2131 = vadd.xlane.f32.xlu0 %v2100
      %v2132 = vpop.xlane.xlu0 %2131
      %2133 = vadd.xlane.f32.xlu0 %v2102
      %v2134 = vpop.xlane.xlu0 %2133
      %2135 = vadd.xlane.f32.xlu0 %v2104
      %v2136 = vpop.xlane.xlu0 %2135
      %2137 = vadd.xlane.f32.xlu0 %v2106
      %v2138 = vpop.xlane.xlu0 %2137
      %2139 = vadd.xlane.f32.xlu0 %v2108
      %v2140 = vpop.xlane.xlu0 %2139
      %2141 = vadd.xlane.f32.xlu0 %v2110
      %v2142 = vpop.xlane.xlu0 %2141
      %2143 = vadd.xlane.f32.xlu0 %v2112
      %v2144 = vpop.xlane.xlu0 %2143
      %2145 = vadd.xlane.f32.xlu0 %v2114
      %v2146 = vpop.xlane.xlu0 %2145
      %2147 = vadd.xlane.f32.xlu0 %v2116
      %v2148 = vpop.xlane.xlu0 %2147
      %2149 = vadd.xlane.f32.xlu0 %v2118
      %v2150 = vpop.xlane.xlu0 %2149
      %2151 = vadd.xlane.f32.xlu0 %v2120
      %v2152 = vpop.xlane.xlu0 %2151
      %2153 = vadd.xlane.f32.xlu0 %v2122
      %v2154 = vpop.xlane.xlu0 %2153
      %2155 = vadd.xlane.f32.xlu0 %v2124
      %v2156 = vpop.xlane.xlu0 %2155
      %2157 = vadd.xlane.f32.xlu0 %v2126
      %v2158 = vpop.xlane.xlu0 %2157
      %2159 = vadd.xlane.f32.xlu0 %v2128
      %v2160 = vpop.xlane.xlu0 %2159
      %v2161 = vlog2.pop %v2130
      %v2162 = vmul.f32 %v2161, 0.6931472
      %v2163 = vlog2.pop %v2132
      %v2164 = vmul.f32 %v2163, 0.6931472
      %v2165 = vlog2.pop %v2134
      %v2166 = vmul.f32 %v2165, 0.6931472
      %v2167 = vlog2.pop %v2136
      %v2168 = vmul.f32 %v2167, 0.6931472
      %v2169 = vlog2.pop %v2138
      %v2170 = vmul.f32 %v2169, 0.6931472
      %v2171 = vlog2.pop %v2140
      %v2172 = vmul.f32 %v2171, 0.6931472
      %v2173 = vlog2.pop %v2142
      %v2174 = vmul.f32 %v2173, 0.6931472
      %v2175 = vlog2.pop %v2144
      %v2176 = vmul.f32 %v2175, 0.6931472
      %v2177 = vlog2.pop %v2146
      %v2178 = vmul.f32 %v2177, 0.6931472
      %v2179 = vlog2.pop %v2148
      %v2180 = vmul.f32 %v2179, 0.6931472
      %v2181 = vlog2.pop %v2150
      %v2182 = vmul.f32 %v2181, 0.6931472
      %v2183 = vlog2.pop %v2152
      %v2184 = vmul.f32 %v2183, 0.6931472
      %v2185 = vlog2.pop %v2154
      %v2186 = vmul.f32 %v2185, 0.6931472
      %v2187 = vlog2.pop %v2156
      %v2188 = vmul.f32 %v2187, 0.6931472
      %v2189 = vlog2.pop %v2158
      %v2190 = vmul.f32 %v2189, 0.6931472
      %v2191 = vlog2.pop %v2160
      %v2192 = vmul.f32 %v2191, 0.6931472
      %v2193 = vsub.f32 %v2081, %v2162
      %v2194 = vsub.f32 %v2082, %v2164
      %v2195 = vsub.f32 %v2083, %v2166
      %v2196 = vsub.f32 %v2084, %v2168
      %v2197 = vsub.f32 %v2085, %v2170
      %v2198 = vsub.f32 %v2086, %v2172
      %v2199 = vsub.f32 %v2087, %v2174
      %v2200 = vsub.f32 %v2088, %v2176
      %v2201 = vsub.f32 %v2089, %v2178
      %v2202 = vsub.f32 %v2090, %v2180
      %v2203 = vsub.f32 %v2091, %v2182
      %v2204 = vsub.f32 %v2092, %v2184
      %v2205 = vsub.f32 %v2093, %v2186
      %v2206 = vsub.f32 %v2094, %v2188
      %v2207 = vsub.f32 %v2095, %v2190
      %v2208 = vsub.f32 %v2096, %v2192
      %2209 = vst [vmem:[%s337] sm:$0xff] %v2193
      %2210 = vst [vmem:[%s337 + $0x8] sm:$0xff] %v2194
      %2211 = vst [vmem:[%s337 + $0x10] sm:$0xff] %v2195
      %2212 = vst [vmem:[%s337 + $0x18] sm:$0xff] %v2196
      %2213 = vst [vmem:[%s337 + $0x20] sm:$0xff] %v2197
      %2214 = vst [vmem:[%s337 + $0x28] sm:$0xff] %v2198
      %2215 = vst [vmem:[%s337 + $0x30] sm:$0xff] %v2199
      %2216 = vst [vmem:[%s337 + $0x38] sm:$0xff] %v2200
      %2217 = vst [vmem:[%s337 + $0x40] sm:$0xff] %v2201
      %2218 = vst [vmem:[%s337 + $0x48] sm:$0xff] %v2202
      %2219 = vst [vmem:[%s337 + $0x50] sm:$0xff] %v2203
      %2220 = vst [vmem:[%s337 + $0x58] sm:$0xff] %v2204
      %2221 = vst [vmem:[%s337 + $0x60] sm:$0xff] %v2205
      %2222 = vst [vmem:[%s337 + $0x68] sm:$0xff] %v2206
      %2223 = vst [vmem:[%s337 + $0x70] sm:$0xff] %v2207
      %2224 = vst [vmem:[%s337 + $0x78] sm:$0xff] %v2208
      %s2225 = smul.u32 16, %s20
      %p2226 = scmp.lt.s32.totalorder %s2225, 47
      %s2227 = scalar_select %p2226, %s2225, 47
      %s2228 = smul.addr %s2227, 8
      %s2229 = scalar_lea.vmem %s9, %s2228
      // Predicated region
      $region57: #{net_forward.1} parent=55 // pred_check
        %p2230 = pneg %p232
      $region58: #{net_forward.1} parent=55 // pred_check_branch
        %2232 = sbr.rel (%p2230) target = $region60
      $region59: #{net_forward.1} parent=55 // pred_region
        %s2233 = smul.u32 16, %s20
      $region60: #{net_forward.1} parent=55 // pred_fallthru
        _
    $region56: #{net_forward.1} parent=5 // pred_fallthru
      _
    %p2234 = scmp.le.s32.totalorder 2, %s15
    // Predicated region
    $region61: #{net_forward.1} parent=5 // pred_check
      %p2235 = pneg %p2234
    $region62: #{net_forward.1} parent=5 // pred_check_branch
      %2237 = sbr.rel (%p2235) target = $region64
    $region63: #{net_forward.1} parent=5 // pred_region
      %s2238 = ssub.s32 %s15, 2
      // Predicated region
      $region65: #{net_forward.1} parent=63 // pred_check
        %p2239 = pneg %p238
      $region66: #{net_forward.1} parent=63 // pred_check_branch
        %2241 = sbr.rel (%p2239) target = $region68
      $region67: #{net_forward.1} parent=63 // pred_region
        %s2242 = smul.u32 16, %s21
        %p2243 = scmp.lt.s32.totalorder %s2242, 47
        %s2244 = scalar_select %p2243, %s2242, 47
        %s2245 = smul.addr %s2244, 8
        %s2246 = scalar_lea.vmem %s9, %s2245
      $region68: #{net_forward.1} parent=63 // pred_fallthru
        _
    $region64: #{net_forward.1} parent=5 // pred_fallthru
      _
  $region6: #{net_forward.1} parent=0 // loop_footer
    %s19 = sadd.s32 1, %s15
  $region7: #{net_forward.1} parent=0 // loop_footer_branch
    %14 = sbr.rel target = $region3
  $region8: #{net_forward.1} parent=0 // loop_exit
    _

</llo_original>
